<compile_context>
chip_gen: v5e
topology: v5e:2x2
jax: 0.10.0
libtpu: 0.0.40
codegen_flags: <defaults>
</compile_context>

<pallas_src>
import functools

import jax
import jax.numpy as jnp
from jax.experimental import pallas as pl
from jax.experimental.pallas import tpu as pltpu

EXPANSION = 4
LAYER_CFG = [(64, 3, 1), (128, 4, 2), (256, 6, 2), (512, 3, 2)]  # ResNet-50
BN_EPS = 1e-5
VMEM_LIMIT = 32 * 1024 * 1024


def _round_up(x, m):
    return ((x + m - 1) // m) * m


# ----------------------------------------------------------------------------
# Pallas kernels
# ----------------------------------------------------------------------------
def _mm_bias_kernel(a_ref, b_ref, c_ref, o_ref, *, relu):
    y = jnp.dot(a_ref[...], b_ref[...], preferred_element_type=jnp.float32)
    y = y + c_ref[...]
    if relu:
        y = jnp.maximum(y, 0.0)
    o_ref[...] = y.astype(o_ref.dtype)


def _mm_bias_res_kernel(a_ref, b_ref, c_ref, r_ref, o_ref, *, relu):
    y = jnp.dot(a_ref[...], b_ref[...], preferred_element_type=jnp.float32)
    y = y + c_ref[...] + r_ref[...].astype(jnp.float32)
    if relu:
        y = jnp.maximum(y, 0.0)
    o_ref[...] = y.astype(o_ref.dtype)


def _dconv3x3_kernel(x_ref, w_ref, b_ref, o_ref, *, wp, m, relu):
    """Direct 3x3 stride-1 pad-1 conv on a flattened, width-padded image.

    x_ref: (1, Hp*Wp, Cin)  padded image, rows flattened (H major, W minor)
    w_ref: (9, Cin, tCout)  tap-major weights, BN scale pre-folded
    b_ref: (1, tCout)       folded BN bias (f32)
    o_ref: (1, H*Wp, tCout) output incl. garbage columns (sliced off by caller)

    Tap (dy, dx) of flat output row r reads flat input row r + dy*Wp + dx,
    i.e. a contiguous row slice -- no im2col and no in-kernel reshape.
    """
    acc = jnp.zeros((m, o_ref.shape[-1]), jnp.float32)
    for dy in range(3):
        for dx in range(3):
            off = dy * wp + dx
            a = x_ref[0, off:off + m, :]
            acc += jnp.dot(a, w_ref[dy * 3 + dx],
                           preferred_element_type=jnp.float32)
    y = acc + b_ref[...]
    if relu:
        y = jnp.maximum(y, 0.0)
    o_ref[0, :, :] = y.astype(o_ref.dtype)


def _maxpool_kernel(ee_ref, eo_ref, oe_ref, oo_ref, o_ref):
    oh, ow = o_ref.shape[1], o_ref.shape[2]
    m = ee_ref[:, 0:oh, 0:ow, :]
    m = jnp.maximum(m, eo_ref[:, 0:oh, 0:ow, :])
    m = jnp.maximum(m, ee_ref[:, 0:oh, 1:ow + 1, :])
    m = jnp.maximum(m, oe_ref[:, 0:oh, 0:ow, :])
    m = jnp.maximum(m, oo_ref[:, 0:oh, 0:ow, :])
    m = jnp.maximum(m, oe_ref[:, 0:oh, 1:ow + 1, :])
    m = jnp.maximum(m, ee_ref[:, 1:oh + 1, 0:ow, :])
    m = jnp.maximum(m, eo_ref[:, 1:oh + 1, 0:ow, :])
    m = jnp.maximum(m, ee_ref[:, 1:oh + 1, 1:ow + 1, :])
    o_ref[...] = m


# ----------------------------------------------------------------------------
# Pallas wrappers
# ----------------------------------------------------------------------------
def matmul_bias_act(a, b, bias, res=None, relu=True):
    """o = act(a @ b + bias [+ res]).

    a:(M,K) bf16, b:(K,N) bf16 (BN scale folded in), bias:(1,N) f32,
    res:(M,N) bf16 -> (M,N) bf16.  The grid order (M-outer vs N-outer) is
    chosen to minimize HBM traffic of the streamed operand.
    """
    m, k = a.shape
    n = b.shape[1]
    tn = min(n, 512)
    assert n % tn == 0
    tm = min(512, _round_up(pl.cdiv(m, pl.cdiv(m, 512)), 16))
    mp = _round_up(m, tm)
    if mp != m:
        a = jnp.pad(a, ((0, mp - m), (0, 0)))
        if res is not None:
            res = jnp.pad(res, ((0, mp - m), (0, 0)))
    tiles_m, tiles_n = mp // tm, n // tn

    # Traffic estimate: the operand indexed by the inner axis is re-streamed
    # once per outer step; keep the more expensive operand resident.
    a_bytes, b_bytes = mp * k * 2, k * n * 2
    n_outer = (b_bytes + tiles_n * a_bytes) <= (a_bytes + tiles_m * b_bytes)
    if n_outer:
        grid = (tiles_n, tiles_m)
        a_map = lambda j, i: (i, 0)
        b_map = lambda j, i: (0, j)
        o_map = lambda j, i: (i, j)
    else:
        grid = (tiles_m, tiles_n)
        a_map = lambda i, j: (i, 0)
        b_map = lambda i, j: (0, j)
        o_map = lambda i, j: (i, j)

    in_specs = [
        pl.BlockSpec((tm, k), a_map),
        pl.BlockSpec((k, tn), b_map),
        pl.BlockSpec((1, tn), b_map),
    ]
    args = [a, b, bias]
    if res is not None:
        in_specs.append(pl.BlockSpec((tm, tn), o_map))
        args.append(res)
        kernel = functools.partial(_mm_bias_res_kernel, relu=relu)
    else:
        kernel = functools.partial(_mm_bias_kernel, relu=relu)

    streamed = tiles_n * a_bytes if n_outer else tiles_m * b_bytes
    resident = b_bytes if n_outer else a_bytes
    bytes_accessed = streamed + resident + mp * n * (4 if res is not None else 2) + n * 4
    out = pl.pallas_call(
        kernel,
        out_shape=jax.ShapeDtypeStruct((mp, n), jnp.bfloat16),
        grid=grid,
        in_specs=in_specs,
        out_specs=pl.BlockSpec((tm, tn), o_map),
        compiler_params=pltpu.CompilerParams(
            dimension_semantics=("parallel", "parallel"),
            vmem_limit_bytes=VMEM_LIMIT),
        cost_estimate=pl.CostEstimate(flops=2 * mp * k * n, transcendentals=0,
                                      bytes_accessed=int(bytes_accessed)),
    )(*args)
    if mp != m:
        out = out[:m]
    return out


def conv3x3_direct(x, p, relu=True):
    """3x3 stride-1 pad-1 conv + folded BN + optional ReLU, NHWC bf16."""
    n, h, w, c = x.shape
    cout = p['w'].shape[-1]
    # Pad 1 row top / 2 rows bottom (the extra row keeps the garbage-column
    # taps of the last output row in bounds) and 1 col each side; flatten
    # (H,W) so every tap is a contiguous row slice of the flat image.
    xp = jnp.pad(x, ((0, 0), (1, 2), (1, 1), (0, 0)))
    hp, wp = h + 3, w + 2
    xf = xp.reshape(n, hp * wp, c)
    mflat = h * wp
    tc = min(cout, 512)
    grid = (n, cout // tc)
    flops = 2 * n * mflat * 9 * c * cout
    bytes_accessed = (n * hp * wp * c + 9 * c * cout + n * mflat * cout) * 2 + cout * 4
    out = pl.pallas_call(
        functools.partial(_dconv3x3_kernel, wp=wp, m=mflat, relu=relu),
        out_shape=jax.ShapeDtypeStruct((n, mflat, cout), jnp.bfloat16),
        grid=grid,
        in_specs=[
            pl.BlockSpec((1, hp * wp, c), lambda b, co: (b, 0, 0)),
            pl.BlockSpec((9, c, tc), lambda b, co: (0, 0, co)),
            pl.BlockSpec((1, tc), lambda b, co: (0, co)),
        ],
        out_specs=pl.BlockSpec((1, mflat, tc), lambda b, co: (b, 0, co)),
        compiler_params=pltpu.CompilerParams(
            dimension_semantics=("parallel", "parallel"),
            vmem_limit_bytes=VMEM_LIMIT),
        cost_estimate=pl.CostEstimate(flops=int(flops), transcendentals=0,
                                      bytes_accessed=int(bytes_accessed)),
    )(xf, p['w'], p['bias'])
    # Drop the Wp-W garbage columns (XLA slice).
    return out.reshape(n, h, wp, cout)[:, :, :w, :]


def maxpool_3x3_s2_p1(x):
    """MaxPool2d(kernel=3, stride=2, padding=1) on NHWC input (bf16)."""
    n, h, w, c = x.shape
    oh = (h + 2 - 3) // 2 + 1
    ow = (w + 2 - 3) // 2 + 1
    neg = jnp.finfo(x.dtype).min
    xp = jnp.pad(x, ((0, 0), (1, 1), (1, 1), (0, 0)), constant_values=neg)
    # Parity split (XLA glue) so the kernel only needs unit-stride slices.
    ee = xp[:, 0::2, 0::2, :]
    eo = xp[:, 0::2, 1::2, :]
    oe = xp[:, 1::2, 0::2, :]
    oo = xp[:, 1::2, 1::2, :]

    tc = 128 if c % 128 == 0 else c
    grid = (n, c // tc)

    def spec(arr):
        return pl.BlockSpec((1, arr.shape[1], arr.shape[2], tc),
                            lambda b, ci: (b, 0, 0, ci))

    return pl.pallas_call(
        _maxpool_kernel,
        out_shape=jax.ShapeDtypeStruct((n, oh, ow, c), x.dtype),
        grid=grid,
        in_specs=[spec(ee), spec(eo), spec(oe), spec(oo)],
        out_specs=pl.BlockSpec((1, oh, ow, tc), lambda b, ci: (b, 0, 0, ci)),
        compiler_params=pltpu.CompilerParams(
            dimension_semantics=("parallel", "parallel")),
    )(ee, eo, oe, oo)


# ----------------------------------------------------------------------------
# Convolution entry points
# ----------------------------------------------------------------------------
def _im2col(x, kh, kw, stride, pad):
    n, h, w, c = x.shape
    oh = (h + 2 * pad - kh) // stride + 1
    ow = (w + 2 * pad - kw) // stride + 1
    xp = jnp.pad(x, ((0, 0), (pad, pad), (pad, pad), (0, 0)))
    cols = []
    for dy in range(kh):
        for dx in range(kw):
            cols.append(xp[:, dy:dy + stride * (oh - 1) + 1:stride,
                           dx:dx + stride * (ow - 1) + 1:stride, :])
    patches = jnp.stack(cols, axis=3)  # (n, oh, ow, kh*kw, c)
    return patches, oh, ow


def conv_im2col(x, p, kh, kw, stride, pad, relu=True):
    """k>1 conv via im2col patches + fused matmul (stem + the 3 stride-2 3x3s)."""
    n = x.shape[0]
    c = x.shape[3]
    patches, oh, ow = _im2col(x, kh, kw, stride, pad)
    k = kh * kw * c
    a = patches.reshape(n * oh * ow, k)
    kb = p['w'].shape[0]
    if kb != k:
        a = jnp.pad(a, ((0, 0), (0, kb - k)))
    y = matmul_bias_act(a, p['w'], p['bias'], relu=relu)
    return y.reshape(n, oh, ow, -1)


def conv1x1(x, p, stride=1, relu=True, residual=None):
    """1x1 conv + folded BN (+ residual) + optional ReLU (pure matmul)."""
    n, h, w, c = x.shape
    xs = x[:, ::stride, ::stride, :] if stride > 1 else x
    oh, ow = xs.shape[1], xs.shape[2]
    a = xs.reshape(n * oh * ow, c)
    r = None
    if residual is not None:
        r = residual.reshape(n * oh * ow, residual.shape[-1])
    y = matmul_bias_act(a, p['w'], p['bias'], res=r, relu=relu)
    return y.reshape(n, oh, ow, -1)


# ----------------------------------------------------------------------------
# Parameter construction (BN folded + weights pre-laid-out at init time)
# ----------------------------------------------------------------------------
def _conv_weight(key, cout, cin, kh, kw):
    fan_in = cin * kh * kw
    return jax.random.normal(key, (cout, cin, kh, kw), jnp.float32) * \
        (2.0 / fan_in) ** 0.5


def _bn_fold(key, c):
    k1, k2 = jax.random.split(key)
    gamma = 1.0 + 0.05 * jax.random.normal(k1, (c,), jnp.float32)
    beta = 0.05 * jax.random.normal(k2, (c,), jnp.float32)
    running_mean = jnp.zeros((c,), jnp.float32)
    running_var = jnp.ones((c,), jnp.float32)
    scale = gamma * jax.lax.rsqrt(running_var + BN_EPS)
    bias = beta - running_mean * scale
    return scale, bias


def _prep_mm(key, cout, cin, kh, kw):
    """(K, Cout) bf16 matmul weight with BN scale folded + (1, Cout) f32 bias."""
    k_w, k_b = jax.random.split(key)
    w = _conv_weight(k_w, cout, cin, kh, kw)
    scale, bias = _bn_fold(k_b, cout)
    b = jnp.transpose(w, (2, 3, 1, 0)).reshape(kh * kw * cin, cout) * scale[None, :]
    k = kh * kw * cin
    kp = _round_up(k, 16)                      # bf16 sublane packing
    if kp != k:
        b = jnp.pad(b, ((0, kp - k), (0, 0)))
    return {'w': b.astype(jnp.bfloat16), 'bias': bias.reshape(1, cout)}


def _prep_direct3x3(key, cout, cin):
    """(9, Cin, Cout) bf16 tap-major weight with BN scale folded + f32 bias."""
    k_w, k_b = jax.random.split(key)
    w = _conv_weight(k_w, cout, cin, 3, 3)
    scale, bias = _bn_fold(k_b, cout)
    wt = jnp.transpose(w, (2, 3, 1, 0)).reshape(9, cin, cout) * scale[None, None, :]
    return {'w': wt.astype(jnp.bfloat16), 'bias': bias.reshape(1, cout)}


def init_params(key):
    cnt = [0]

    def nk():
        cnt[0] += 1
        return jax.random.fold_in(key, cnt[0])

    params = {'stem': _prep_mm(nk(), 64, 3, 7, 7)}   # K=147 padded to 160

    layers = []
    inplanes = 64
    for planes, nblocks, stride in LAYER_CFG:
        width = planes                      # groups=1, base_width=64
        outp = planes * EXPANSION
        blocks = []
        for bi in range(nblocks):
            bstride = stride if bi == 0 else 1
            bp = {'c1': _prep_mm(nk(), width, inplanes, 1, 1)}
            if bstride == 1:
                bp['c2'] = _prep_direct3x3(nk(), width, width)
            else:
                bp['c2'] = _prep_mm(nk(), width, width, 3, 3)
            bp['c3'] = _prep_mm(nk(), outp, width, 1, 1)
            if bi == 0:                     # downsample branch
                bp['cd'] = _prep_mm(nk(), outp, inplanes, 1, 1)
            blocks.append(bp)
            inplanes = outp
        rest = None
        if len(blocks) > 1:
            rest = jax.tree_util.tree_map(lambda *xs: jnp.stack(xs, 0), *blocks[1:])
        layers.append({'first': blocks[0], 'rest': rest})
    params['layers'] = layers
    return params


# ----------------------------------------------------------------------------
# ResNet-50 forward
# ----------------------------------------------------------------------------
def bottleneck(x, bp, stride):
    identity = x
    out = conv1x1(x, bp['c1'], relu=True)
    if stride == 1:
        out = conv3x3_direct(out, bp['c2'], relu=True)
    else:
        out = conv_im2col(out, bp['c2'], 3, 3, stride, 1, relu=True)
    if 'cd' in bp:
        identity = conv1x1(x, bp['cd'], stride=stride, relu=False)
    # conv3 + bn3 + residual add + final ReLU, fused in one matmul kernel.
    out = conv1x1(out, bp['c3'], relu=True, residual=identity)
    return out


def resnet50_forward(params, x_nchw):
    # NCHW (PyTorch) -> NHWC internal, bf16 activations.
    x = jnp.transpose(x_nchw, (0, 2, 3, 1)).astype(jnp.bfloat16)
    x = conv_im2col(x, params['stem'], 7, 7, 2, 3, relu=True)
    x = maxpool_3x3_s2_p1(x)

    feats = []
    for li, (_, _, stride) in enumerate(LAYER_CFG):
        lp = params['layers'][li]
        x = bottleneck(x, lp['first'], stride)
        if lp['rest'] is not None:
            def body(carry, bp):
                return bottleneck(carry, bp, 1), None
            x, _ = jax.lax.scan(body, x, lp['rest'])
        if li >= 1:                      # c3 = layer2, c4 = layer3, c5 = layer4
            feats.append(jnp.transpose(x.astype(jnp.float32), (0, 3, 1, 2)))
    return feats


if __name__ == "__main__":
    # Sanity-check the direct 3x3 conv kernel against lax.conv (loose bf16 tol).
    kx, kw = jax.random.split(jax.random.PRNGKey(42))
    xt = jax.random.normal(kx, (2, 8, 8, 64), jnp.float32).astype(jnp.bfloat16)
    wt = (jax.random.normal(kw, (3, 3, 64, 128), jnp.float32) * 0.06
          ).astype(jnp.bfloat16)
    pt = {'w': wt.reshape(9, 64, 128), 'bias': jnp.zeros((1, 128), jnp.float32)}
    got = conv3x3_direct(xt, pt, relu=False).astype(jnp.float32)
    ref = jax.lax.conv_general_dilated(
        xt.astype(jnp.float32), wt.astype(jnp.float32),
        window_strides=(1, 1), padding=((1, 1), (1, 1)),
        dimension_numbers=('NHWC', 'HWIO', 'NHWC'))
    assert float(jnp.max(jnp.abs(got - ref))) < 0.25, "direct 3x3 conv mismatch"

    x = jax.random.normal(jax.random.PRNGKey(0), (2, 3, 64, 64), jnp.float32)
    params = init_params(jax.random.PRNGKey(1))

    fwd = jax.jit(resnet50_forward)
    c3, c4, c5 = jax.block_until_ready(fwd(params, x))

    assert c3.shape == (2, 512, 8, 8), c3.shape
    assert c4.shape == (2, 1024, 4, 4), c4.shape
    assert c5.shape == (2, 2048, 2, 2), c5.shape
    assert bool(jnp.all(jnp.isfinite(c3)))
    assert bool(jnp.all(jnp.isfinite(c4)))
    assert bool(jnp.all(jnp.isfinite(c5)))
    print("KERNEL_OK")
</pallas_src>

<mosaic_0001>
module attributes {stable_mosaic.version = 11 : i64} {
  func.func @_dconv3x3_kernel(%arg0: i32, %arg1: i32, %arg2: memref<1x110x64xbf16, #tpu.memory_space<vmem>>, %arg3: memref<9x64x128xbf16, #tpu.memory_space<vmem>>, %arg4: memref<1x128xf32, #tpu.memory_space<vmem>>, %arg5: memref<1x80x128xbf16, #tpu.memory_space<vmem>>) attributes {dimension_semantics = [#tpu.dimension_semantics<parallel>, #tpu.dimension_semantics<parallel>], iteration_bounds = array<i64: 2, 1>, scalar_prefetch = 0 : i64, scratch_operands = 0 : i64, tpu.core_type = #tpu.core_type<tc>, window_params = [{transform_indices = @transform_0, window_bounds = array<i64: 1, 110, 64>}, {transform_indices = @transform_1, window_bounds = array<i64: 9, 64, 128>}, {transform_indices = @transform_2, window_bounds = array<i64: 1, 128>}, {transform_indices = @transform_3, window_bounds = array<i64: 1, 80, 128>}]} {
    %cst = arith.constant 0.000000e+00 : f32
    %0 = vector.broadcast %cst : f32 to vector<80x128xf32>
    %c0 = arith.constant 0 : index
    %c0_0 = arith.constant 0 : index
    %c0_1 = arith.constant 0 : index
    %1 = vector.load %arg2[%c0, %c0_0, %c0_1] : memref<1x110x64xbf16, #tpu.memory_space<vmem>>, vector<1x80x64xbf16>
    %2 = vector.shape_cast %1 : vector<1x80x64xbf16> to vector<80x64xbf16>
    %c0_2 = arith.constant 0 : index
    %c0_3 = arith.constant 0 : index
    %c0_4 = arith.constant 0 : index
    %3 = vector.load %arg3[%c0_2, %c0_3, %c0_4] : memref<9x64x128xbf16, #tpu.memory_space<vmem>>, vector<1x64x128xbf16>
    %4 = vector.shape_cast %3 : vector<1x64x128xbf16> to vector<64x128xbf16>
    %cst_5 = arith.constant dense<0.000000e+00> : vector<80x128xf32>
    %5 = tpu.matmul %2, %4, %cst_5 {dimension_numbers = #tpu.dot_dimension_numbers<[1], [0], [0], [1], [0, 0, 1, 1], [], []>} : vector<80x64xbf16>, vector<64x128xbf16>, vector<80x128xf32> -> vector<80x128xf32>
    %6 = arith.addf %0, %5 : vector<80x128xf32>
    %c0_6 = arith.constant 0 : index
    %c1 = arith.constant 1 : index
    %c0_7 = arith.constant 0 : index
    %7 = vector.load %arg2[%c0_6, %c1, %c0_7] : memref<1x110x64xbf16, #tpu.memory_space<vmem>>, vector<1x80x64xbf16>
    %8 = vector.shape_cast %7 : vector<1x80x64xbf16> to vector<80x64xbf16>
    %c1_8 = arith.constant 1 : index
    %c0_9 = arith.constant 0 : index
    %c0_10 = arith.constant 0 : index
    %9 = vector.load %arg3[%c1_8, %c0_9, %c0_10] : memref<9x64x128xbf16, #tpu.memory_space<vmem>>, vector<1x64x128xbf16>
    %10 = vector.shape_cast %9 : vector<1x64x128xbf16> to vector<64x128xbf16>
    %cst_11 = arith.constant dense<0.000000e+00> : vector<80x128xf32>
    %11 = tpu.matmul %8, %10, %cst_11 {dimension_numbers = #tpu.dot_dimension_numbers<[1], [0], [0], [1], [0, 0, 1, 1], [], []>} : vector<80x64xbf16>, vector<64x128xbf16>, vector<80x128xf32> -> vector<80x128xf32>
    %12 = arith.addf %6, %11 : vector<80x128xf32>
    %c0_12 = arith.constant 0 : index
    %c2 = arith.constant 2 : index
    %c0_13 = arith.constant 0 : index
    %13 = vector.load %arg2[%c0_12, %c2, %c0_13] : memref<1x110x64xbf16, #tpu.memory_space<vmem>>, vector<1x80x64xbf16>
    %14 = vector.shape_cast %13 : vector<1x80x64xbf16> to vector<80x64xbf16>
    %c2_14 = arith.constant 2 : index
    %c0_15 = arith.constant 0 : index
    %c0_16 = arith.constant 0 : index
    %15 = vector.load %arg3[%c2_14, %c0_15, %c0_16] : memref<9x64x128xbf16, #tpu.memory_space<vmem>>, vector<1x64x128xbf16>
    %16 = vector.shape_cast %15 : vector<1x64x128xbf16> to vector<64x128xbf16>
    %cst_17 = arith.constant dense<0.000000e+00> : vector<80x128xf32>
    %17 = tpu.matmul %14, %16, %cst_17 {dimension_numbers = #tpu.dot_dimension_numbers<[1], [0], [0], [1], [0, 0, 1, 1], [], []>} : vector<80x64xbf16>, vector<64x128xbf16>, vector<80x128xf32> -> vector<80x128xf32>
    %18 = arith.addf %12, %17 : vector<80x128xf32>
    %c0_18 = arith.constant 0 : index
    %c10 = arith.constant 10 : index
    %c0_19 = arith.constant 0 : index
    %19 = vector.load %arg2[%c0_18, %c10, %c0_19] : memref<1x110x64xbf16, #tpu.memory_space<vmem>>, vector<1x80x64xbf16>
    %20 = vector.shape_cast %19 : vector<1x80x64xbf16> to vector<80x64xbf16>
    %c3 = arith.constant 3 : index
    %c0_20 = arith.constant 0 : index
    %c0_21 = arith.constant 0 : index
    %21 = vector.load %arg3[%c3, %c0_20, %c0_21] : memref<9x64x128xbf16, #tpu.memory_space<vmem>>, vector<1x64x128xbf16>
    %22 = vector.shape_cast %21 : vector<1x64x128xbf16> to vector<64x128xbf16>
    %cst_22 = arith.constant dense<0.000000e+00> : vector<80x128xf32>
    %23 = tpu.matmul %20, %22, %cst_22 {dimension_numbers = #tpu.dot_dimension_numbers<[1], [0], [0], [1], [0, 0, 1, 1], [], []>} : vector<80x64xbf16>, vector<64x128xbf16>, vector<80x128xf32> -> vector<80x128xf32>
    %24 = arith.addf %18, %23 : vector<80x128xf32>
    %c0_23 = arith.constant 0 : index
    %c11 = arith.constant 11 : index
    %c0_24 = arith.constant 0 : index
    %25 = vector.load %arg2[%c0_23, %c11, %c0_24] : memref<1x110x64xbf16, #tpu.memory_space<vmem>>, vector<1x80x64xbf16>
    %26 = vector.shape_cast %25 : vector<1x80x64xbf16> to vector<80x64xbf16>
    %c4 = arith.constant 4 : index
    %c0_25 = arith.constant 0 : index
    %c0_26 = arith.constant 0 : index
    %27 = vector.load %arg3[%c4, %c0_25, %c0_26] : memref<9x64x128xbf16, #tpu.memory_space<vmem>>, vector<1x64x128xbf16>
    %28 = vector.shape_cast %27 : vector<1x64x128xbf16> to vector<64x128xbf16>
    %cst_27 = arith.constant dense<0.000000e+00> : vector<80x128xf32>
    %29 = tpu.matmul %26, %28, %cst_27 {dimension_numbers = #tpu.dot_dimension_numbers<[1], [0], [0], [1], [0, 0, 1, 1], [], []>} : vector<80x64xbf16>, vector<64x128xbf16>, vector<80x128xf32> -> vector<80x128xf32>
    %30 = arith.addf %24, %29 : vector<80x128xf32>
    %c0_28 = arith.constant 0 : index
    %c12 = arith.constant 12 : index
    %c0_29 = arith.constant 0 : index
    %31 = vector.load %arg2[%c0_28, %c12, %c0_29] : memref<1x110x64xbf16, #tpu.memory_space<vmem>>, vector<1x80x64xbf16>
    %32 = vector.shape_cast %31 : vector<1x80x64xbf16> to vector<80x64xbf16>
    %c5 = arith.constant 5 : index
    %c0_30 = arith.constant 0 : index
    %c0_31 = arith.constant 0 : index
    %33 = vector.load %arg3[%c5, %c0_30, %c0_31] : memref<9x64x128xbf16, #tpu.memory_space<vmem>>, vector<1x64x128xbf16>
    %34 = vector.shape_cast %33 : vector<1x64x128xbf16> to vector<64x128xbf16>
    %cst_32 = arith.constant dense<0.000000e+00> : vector<80x128xf32>
    %35 = tpu.matmul %32, %34, %cst_32 {dimension_numbers = #tpu.dot_dimension_numbers<[1], [0], [0], [1], [0, 0, 1, 1], [], []>} : vector<80x64xbf16>, vector<64x128xbf16>, vector<80x128xf32> -> vector<80x128xf32>
    %36 = arith.addf %30, %35 : vector<80x128xf32>
    %c0_33 = arith.constant 0 : index
    %c20 = arith.constant 20 : index
    %c0_34 = arith.constant 0 : index
    %37 = vector.load %arg2[%c0_33, %c20, %c0_34] : memref<1x110x64xbf16, #tpu.memory_space<vmem>>, vector<1x80x64xbf16>
    %38 = vector.shape_cast %37 : vector<1x80x64xbf16> to vector<80x64xbf16>
    %c6 = arith.constant 6 : index
    %c0_35 = arith.constant 0 : index
    %c0_36 = arith.constant 0 : index
    %39 = vector.load %arg3[%c6, %c0_35, %c0_36] : memref<9x64x128xbf16, #tpu.memory_space<vmem>>, vector<1x64x128xbf16>
    %40 = vector.shape_cast %39 : vector<1x64x128xbf16> to vector<64x128xbf16>
    %cst_37 = arith.constant dense<0.000000e+00> : vector<80x128xf32>
    %41 = tpu.matmul %38, %40, %cst_37 {dimension_numbers = #tpu.dot_dimension_numbers<[1], [0], [0], [1], [0, 0, 1, 1], [], []>} : vector<80x64xbf16>, vector<64x128xbf16>, vector<80x128xf32> -> vector<80x128xf32>
    %42 = arith.addf %36, %41 : vector<80x128xf32>
    %c0_38 = arith.constant 0 : index
    %c21 = arith.constant 21 : index
    %c0_39 = arith.constant 0 : index
    %43 = vector.load %arg2[%c0_38, %c21, %c0_39] : memref<1x110x64xbf16, #tpu.memory_space<vmem>>, vector<1x80x64xbf16>
    %44 = vector.shape_cast %43 : vector<1x80x64xbf16> to vector<80x64xbf16>
    %c7 = arith.constant 7 : index
    %c0_40 = arith.constant 0 : index
    %c0_41 = arith.constant 0 : index
    %45 = vector.load %arg3[%c7, %c0_40, %c0_41] : memref<9x64x128xbf16, #tpu.memory_space<vmem>>, vector<1x64x128xbf16>
    %46 = vector.shape_cast %45 : vector<1x64x128xbf16> to vector<64x128xbf16>
    %cst_42 = arith.constant dense<0.000000e+00> : vector<80x128xf32>
    %47 = tpu.matmul %44, %46, %cst_42 {dimension_numbers = #tpu.dot_dimension_numbers<[1], [0], [0], [1], [0, 0, 1, 1], [], []>} : vector<80x64xbf16>, vector<64x128xbf16>, vector<80x128xf32> -> vector<80x128xf32>
    %48 = arith.addf %42, %47 : vector<80x128xf32>
    %c0_43 = arith.constant 0 : index
    %c22 = arith.constant 22 : index
    %c0_44 = arith.constant 0 : index
    %49 = vector.load %arg2[%c0_43, %c22, %c0_44] : memref<1x110x64xbf16, #tpu.memory_space<vmem>>, vector<1x80x64xbf16>
    %50 = vector.shape_cast %49 : vector<1x80x64xbf16> to vector<80x64xbf16>
    %c8 = arith.constant 8 : index
    %c0_45 = arith.constant 0 : index
    %c0_46 = arith.constant 0 : index
    %51 = vector.load %arg3[%c8, %c0_45, %c0_46] : memref<9x64x128xbf16, #tpu.memory_space<vmem>>, vector<1x64x128xbf16>
    %52 = vector.shape_cast %51 : vector<1x64x128xbf16> to vector<64x128xbf16>
    %cst_47 = arith.constant dense<0.000000e+00> : vector<80x128xf32>
    %53 = tpu.matmul %50, %52, %cst_47 {dimension_numbers = #tpu.dot_dimension_numbers<[1], [0], [0], [1], [0, 0, 1, 1], [], []>} : vector<80x64xbf16>, vector<64x128xbf16>, vector<80x128xf32> -> vector<80x128xf32>
    %54 = arith.addf %48, %53 : vector<80x128xf32>
    %c0_48 = arith.constant 0 : index
    %c0_49 = arith.constant 0 : index
    %55 = vector.load %arg4[%c0_48, %c0_49] : memref<1x128xf32, #tpu.memory_space<vmem>>, vector<1x128xf32>
    %56 = vector.broadcast %55 : vector<1x128xf32> to vector<80x128xf32>
    %57 = arith.addf %54, %56 : vector<80x128xf32>
    %58 = arith.truncf %57 : vector<80x128xf32> to vector<80x128xbf16>
    %c0_50 = arith.constant 0 : index
    %c0_51 = arith.constant 0 : index
    %c0_52 = arith.constant 0 : index
    %59 = vector.load %arg5[%c0_50, %c0_51, %c0_52] : memref<1x80x128xbf16, #tpu.memory_space<vmem>>, vector<1x80x128xbf16>
    %60 = vector.shape_cast %59 : vector<1x80x128xbf16> to vector<80x128xbf16>
    %61 = vector.shape_cast %58 : vector<80x128xbf16> to vector<1x80x128xbf16>
    tpu.vector_store %arg5[%c0_50, %c0_51, %c0_52], %61 {strides = array<i32>} : memref<1x80x128xbf16, #tpu.memory_space<vmem>>, vector<1x80x128xbf16>,
    return
  }
  func.func @transform_0(%arg0: i32, %arg1: i32) -> (i32, i32, i32) {
    %c0_i32 = arith.constant 0 : i32
    %c0_i32_0 = arith.constant 0 : i32
    %c0_i32_1 = arith.constant 0 : i32
    return %arg0, %c0_i32, %c0_i32_0 : i32, i32, i32
  }
  func.func @transform_1(%arg0: i32, %arg1: i32) -> (i32, i32, i32) {
    %c0_i32 = arith.constant 0 : i32
    %c0_i32_0 = arith.constant 0 : i32
    %c0_i32_1 = arith.constant 0 : i32
    return %c0_i32, %c0_i32_0, %arg1 : i32, i32, i32
  }
  func.func @transform_2(%arg0: i32, %arg1: i32) -> (i32, i32) {
    %c0_i32 = arith.constant 0 : i32
    %c0_i32_0 = arith.constant 0 : i32
    return %c0_i32, %arg1 : i32, i32
  }
  func.func @transform_3(%arg0: i32, %arg1: i32) -> (i32, i32, i32) {
    %c0_i32 = arith.constant 0 : i32
    %c0_i32_0 = arith.constant 0 : i32
    return %arg0, %c0_i32, %arg1 : i32, i32, i32
  }
}

</mosaic_0001>

<llo_original>
// kernel: tpu_custom_call.1
$region0: #{tpu_custom_call.1}
  #allocation0 [shape = 'u32[]', space=smem, size = 0x4, offset = 0x4, fixed_abs, tag = 'smem constant byte address 0x4 - core index']
  #allocation1 [shape = 'u32[72,128]{1,0:T(1,128)}', space=vmem, size = 0x9000, scoped, tag = 'internal scratch']
  %s0 = inlined_call_operand.vmem [shape: bf16[2,110,64], index: 0, kind: input, shape index: {}]
  %s1 = inlined_call_operand.hbm [shape: bf16[9,64,128], index: 1, kind: input, shape index: {}]
  %s2 = inlined_call_operand.vmem [shape: f32[1,128], index: 2, kind: input, shape index: {}]
  %s3 = inlined_call_operand.hbm [shape: bf16[2,80,128], index: 3, kind: output, shape index: {}]
  %s4 = sld [smem:[#allocation0]]
  $region49: #{tpu_custom_call.1} parent=0
    _
  %s6 = ssub.s32 1, %s4
  %s7 = scalar_select 0, %s6, %s4
  $region1: #{tpu_custom_call.1} parent=0
    #allocation2 [shape = 'u8[147456]{0}', space=vmem, size = 0x24000, scoped, tag = 'input window, operand 1, single buffered']
    #allocation3 [shape = 's32[2]{0}', space=sflag, size = 0x8, scoped, tag = 'scoped memory for tpu_custom_call.1']
    #allocation4 [shape = 's32[2]{0}', space=sflag, size = 0x8, scoped, tag = 'scoped memory for tpu_custom_call.1']
    #allocation5 [shape = 'u8[40960]{0}', space=vmem, size = 0xa000, scoped, tag = 'output window, operand 0']
    %8 = vsyncpa [#allocation3], 0
    %9 = vsyncpa [#allocation4], 0
    %s10 = scalar_lea.sflag [#allocation4], 1
    %11 = vsyncpa %s10, 0
    loop: start=0, step=1, limit=4
    $region2: #{tpu_custom_call.1} parent=1 // loop_pre_header
      _
    $region3: #{tpu_custom_call.1} parent=1 // loop_header
      %s13 = sphi 0, %s17
      %p14 = scmp.ge.s32.totalorder %s13, 4
      %s20 = sphi 0, %s32
      %s21 = sphi 0, %s28
      %s22 = sphi 0, %s20
      %s23 = sphi 0, %s21
      %s24 = sphi 0, %s22
      %s25 = sphi 0, %s23
      %s35 = sphi 0, %s37
      %s38 = sphi 0, %s35
      %s39 = sphi 0, %s38
      %s55 = sphi 0, %s39
      %s61 = sphi 0, %s63
      %s64 = sphi 0, %s61
      %s65 = sphi 0, %s64
      %s81 = sphi 0, %s65
      %s87 = sphi 0, %s89
      %s90 = sphi 0, %s87
      %s91 = sphi 0, %s90
      %s107 = sphi 0, %s91
      %s115 = sphi 0, %s117
      %s118 = sphi 0, %s115
      %s119 = sphi 0, %s118
      %s135 = sphi 0, %s119
    $region4: #{tpu_custom_call.1} parent=1 // loop_header_branch
      %16 = sbr.rel (%p14) target = $region8
    $region5: #{tpu_custom_call.1} parent=1 // loop_body
      %s18 = ssub.s32 %s13, 1
      %s19 = ssub.s32 %s13, 2
      %s26 = sadd.s32 1, %s21
      %p27 = scmp.ge.s32.totalorder %s26, 1
      %s28 = scalar_select %p27, 0, %s26
      %s29 = sadd.s32 1, %s20
      %s30 = scalar_select %p27, %s29, %s20
      %p31 = scmp.ge.s32.totalorder %s30, 2
      %s32 = scalar_select %p31, 0, %s30
      %s33 = ssub.s32 %s20, %s32
      %p34 = scmp.eq.s32.totalorder %s33, 0
      %s36 = sadd.s32 %s35, 1
      %s37 = scalar_select %p34, %s35, %s36
      %p40 = pneg %p34
      %p41 = scmp.eq.s32.totalorder %s13, 1
      %p42 = por %p40, %p41
      %p43 = scmp.ne.s32.totalorder %s35, %s38
      %p44 = scmp.eq.s32.totalorder %s13, 0
      %p45 = por %p43, %p44
      %p46 = scmp.ne.s32.totalorder %s35, %s38
      %p47 = scmp.eq.s32.totalorder %s18, 1
      %p48 = por %p46, %p47
      %p49 = scmp.ne.s32.totalorder %s38, %s39
      %p50 = scmp.eq.s32.totalorder %s18, 0
      %p51 = por %p49, %p50
      %p52 = scmp.ne.s32.totalorder %s38, %s39
      %p53 = scmp.eq.s32.totalorder %s19, 1
      %p54 = por %p52, %p53
      %p56 = scmp.ne.s32.totalorder %s39, %s55
      %p57 = scmp.eq.s32.totalorder %s19, 0
      %p58 = por %p56, %p57
      %s59 = ssub.s32 %s21, %s28
      %p60 = scmp.eq.s32.totalorder %s59, 0
      %s62 = sadd.s32 %s61, 1
      %s63 = scalar_select %p60, %s61, %s62
      %p66 = pneg %p60
      %p67 = scmp.eq.s32.totalorder %s13, 1
      %p68 = por %p66, %p67
      %p69 = scmp.ne.s32.totalorder %s61, %s64
      %p70 = scmp.eq.s32.totalorder %s13, 0
      %p71 = por %p69, %p70
      %p72 = scmp.ne.s32.totalorder %s61, %s64
      %p73 = scmp.eq.s32.totalorder %s18, 1
      %p74 = por %p72, %p73
      %p75 = scmp.ne.s32.totalorder %s64, %s65
      %p76 = scmp.eq.s32.totalorder %s18, 0
      %p77 = por %p75, %p76
      %p78 = scmp.ne.s32.totalorder %s64, %s65
      %p79 = scmp.eq.s32.totalorder %s19, 1
      %p80 = por %p78, %p79
      %p82 = scmp.ne.s32.totalorder %s65, %s81
      %p83 = scmp.eq.s32.totalorder %s19, 0
      %p84 = por %p82, %p83
      %s85 = ssub.s32 %s21, %s28
      %p86 = scmp.eq.s32.totalorder %s85, 0
      %s88 = sadd.s32 %s87, 1
      %s89 = scalar_select %p86, %s87, %s88
      %p92 = pneg %p86
      %p93 = scmp.eq.s32.totalorder %s13, 1
      %p94 = por %p92, %p93
      %p95 = scmp.ne.s32.totalorder %s87, %s90
      %p96 = scmp.eq.s32.totalorder %s13, 0
      %p97 = por %p95, %p96
      %p98 = scmp.ne.s32.totalorder %s87, %s90
      %p99 = scmp.eq.s32.totalorder %s18, 1
      %p100 = por %p98, %p99
      %p101 = scmp.ne.s32.totalorder %s90, %s91
      %p102 = scmp.eq.s32.totalorder %s18, 0
      %p103 = por %p101, %p102
      %p104 = scmp.ne.s32.totalorder %s90, %s91
      %p105 = scmp.eq.s32.totalorder %s19, 1
      %p106 = por %p104, %p105
      %p108 = scmp.ne.s32.totalorder %s91, %s107
      %p109 = scmp.eq.s32.totalorder %s19, 0
      %p110 = por %p108, %p109
      %s111 = ssub.s32 %s20, %s32
      %s112 = ssub.s32 %s21, %s28
      %s113 = sor.u32 %s111, %s112
      %p114 = scmp.eq.s32.totalorder %s113, 0
      %s116 = sadd.s32 %s115, 1
      %s117 = scalar_select %p114, %s115, %s116
      %p120 = pneg %p114
      %p121 = scmp.eq.s32.totalorder %s13, 1
      %p122 = por %p120, %p121
      %p123 = scmp.ne.s32.totalorder %s115, %s118
      %p124 = scmp.eq.s32.totalorder %s13, 0
      %p125 = por %p123, %p124
      %p126 = scmp.ne.s32.totalorder %s115, %s118
      %p127 = scmp.eq.s32.totalorder %s18, 1
      %p128 = por %p126, %p127
      %p129 = scmp.ne.s32.totalorder %s118, %s119
      %p130 = scmp.eq.s32.totalorder %s18, 0
      %p131 = por %p129, %p130
      %p132 = scmp.ne.s32.totalorder %s118, %s119
      %p133 = scmp.eq.s32.totalorder %s19, 1
      %p134 = por %p132, %p133
      %p136 = scmp.ne.s32.totalorder %s119, %s135
      %p137 = scmp.eq.s32.totalorder %s19, 0
      %p138 = por %p136, %p137
      %p139 = scmp.le.s32.totalorder 1, %s13
      %p140 = scmp.lt.s32.totalorder %s13, 3
      %p141 = pnand %p139, %p140
      %p142 = pneg %p141
      // Predicated region
      $region9: #{tpu_custom_call.1} parent=5 // pred_check
        _
      $region10: #{tpu_custom_call.1} parent=5 // pred_check_branch
        %144 = sbr.rel (%p141) target = $region12
      $region11: #{tpu_custom_call.1} parent=5 // pred_region
        %s145 = ssub.s32 %s13, 1
        // Predicated region
        $region13: #{tpu_custom_call.1} parent=11 // pred_check
          %p146 = pneg %p77
        $region14: #{tpu_custom_call.1} parent=11 // pred_check_branch
          %148 = sbr.rel (%p146) target = $region16
        $region15: #{tpu_custom_call.1} parent=11 // pred_region
          %150 = vsyncadd [#allocation3], 0
          %s151 = smul.addr %s23, 4
          %s152 = scalar_lea.hbm %s1, %s151
          %s153 = sshll.u32 %s152, 4
          %s154 = int_to_ptr.hbm [resolvable:$true] %s153
          %s155 = sshll.u32 [#allocation2], 4
          %s156 = int_to_ptr.vmem [resolvable:$true] %s155
          %161 = dma.hbm_to_vmem [thread:$0]  %s154, 4608, %s156, [#allocation3], 64, 64, 4
        $region16: #{tpu_custom_call.1} parent=11 // pred_fallthru
          _
        // Predicated region
        $region17: #{tpu_custom_call.1} parent=11 // pred_check
          %p162 = pneg %p103
        $region18: #{tpu_custom_call.1} parent=11 // pred_check_branch
          %164 = sbr.rel (%p162) target = $region20
        $region19: #{tpu_custom_call.1} parent=11 // pred_region
          %p165 = scmp.lt.s32.totalorder %s23, 0
          %s166 = scalar_select %p165, %s23, 0
          %s167 = scalar_lea.vmem %s2, %s166
        $region20: #{tpu_custom_call.1} parent=11 // pred_fallthru
          _
      $region12: #{tpu_custom_call.1} parent=5 // pred_fallthru
        _
      %p168 = scmp.lt.s32.totalorder %s13, 2
      // Predicated region
      $region21: #{tpu_custom_call.1} parent=5 // pred_check
        %p169 = pneg %p168
      $region22: #{tpu_custom_call.1} parent=5 // pred_check_branch
        %171 = sbr.rel (%p169) target = $region24
      $region23: #{tpu_custom_call.1} parent=5 // pred_region
        // Predicated region
        $region25: #{tpu_custom_call.1} parent=23 // pred_check
          %p172 = pneg %p45
        $region26: #{tpu_custom_call.1} parent=23 // pred_check_branch
          %174 = sbr.rel (%p172) target = $region28
        $region27: #{tpu_custom_call.1} parent=23 // pred_region
          %p175 = scmp.lt.s32.totalorder %s20, 1
          %s176 = scalar_select %p175, %s20, 1
          %s177 = smul.addr %s176, 14
          %s178 = smul.addr %s177, 4
          %s179 = scalar_lea.vmem %s0, %s178
        $region28: #{tpu_custom_call.1} parent=23 // pred_fallthru
          _
      $region24: #{tpu_custom_call.1} parent=5 // pred_fallthru
        _
      %p180 = scmp.le.s32.totalorder 1, %s13
      %p181 = scmp.lt.s32.totalorder %s13, 3
      %p182 = pnand %p180, %p181
      %p183 = pneg %p182
      // Predicated region
      $region29: #{tpu_custom_call.1} parent=5 // pred_check
        _
      $region30: #{tpu_custom_call.1} parent=5 // pred_check_branch
        %185 = sbr.rel (%p182) target = $region32
      $region31: #{tpu_custom_call.1} parent=5 // pred_region
        %s186 = ssub.s32 %s13, 1
        // Predicated region
        $region33: #{tpu_custom_call.1} parent=31 // pred_check
          %p187 = pneg %p77
        $region34: #{tpu_custom_call.1} parent=31 // pred_check_branch
          %189 = sbr.rel (%p187) target = $region36
        $region35: #{tpu_custom_call.1} parent=31 // pred_region
          %191 = dma.done [#allocation3], 4608
        $region36: #{tpu_custom_call.1} parent=31 // pred_fallthru
          _
        %p192 = scmp.lt.s32.totalorder %s22, 1
        %s193 = scalar_select %p192, %s22, 1
        %s194 = smul.addr %s193, 14
        %s195 = smul.addr %s194, 4
        %s196 = scalar_lea.vmem %s0, %s195
        %p197 = pneg %p51
        %p198 = pneg %p48
        %p199 = pneg %p77
        %p200 = pneg %p74
        %p201 = scmp.lt.s32.totalorder %s23, 0
        %s202 = scalar_select %p201, %s23, 0
        %s203 = scalar_lea.vmem %s2, %s202
        %p204 = pneg %p103
        %p205 = pneg %p100
        %p206 = pneg %p131
        %p207 = pneg %p128
        %s208 = sand.u32 %s118, 1
        %s209 = scalar_lea.sflag [#allocation4], %s208
        %s210 = sand.u32 %s118, 1
        %s211 = smul.addr %s210, 40
        %s212 = scalar_lea.vmem [#allocation5], %s211
        %p213 = scmp.lt.s32.totalorder %s22, 1
        %s214 = scalar_select %p213, %s22, 1
        %s215 = smul.addr %s214, 14
        %s216 = smul.addr %s215, 4
        %s217 = scalar_lea.vmem %s0, %s216
        %p218 = scmp.lt.s32.totalorder %s23, 0
        %s219 = scalar_select %p218, %s23, 0
        %s220 = scalar_lea.vmem %s2, %s219
        %v222 = vld [vmem:[%s217] sm:$0xf]
        %v223 = vld [vmem:[%s217 + $0x4] sm:$0xf]
        %v224 = vld [vmem:[%s217 + $0x8] sm:$0xf]
        %v225 = vld [vmem:[%s217 + $0xc] sm:$0xf]
        %v226 = vld [vmem:[%s217 + $0x10] sm:$0xf]
        %v227 = vld [vmem:[%s217 + $0x14] sm:$0xf]
        %v228 = vld [vmem:[%s217 + $0x18] sm:$0xf]
        %v229 = vld [vmem:[%s217 + $0x1c] sm:$0xf]
        %v230 = vld [vmem:[%s217 + $0x20] sm:$0xf]
        %v231 = vld [vmem:[%s217 + $0x24] sm:$0xf]
        %v232 = vld [vmem:[#allocation2] sm:$0xf]
        %v233 = vld [vmem:[#allocation2 + $0x4] sm:$0xf]
        %v234 = vld [vmem:[#allocation2 + $0x8] sm:$0xf]
        %v235 = vld [vmem:[#allocation2 + $0xc] sm:$0xf]
        %v236 = vld [vmem:[#allocation2 + $0x10] sm:$0xf]
        %v237 = vld [vmem:[#allocation2 + $0x14] sm:$0xf]
        %v238 = vld [vmem:[#allocation2 + $0x18] sm:$0xf]
        %v239 = vld [vmem:[#allocation2 + $0x1c] sm:$0xf]
        %v240 = vld [vmem:[%s217 + $0x28] sm:$0x1]
        %s241 = scalar_lea.vmem [#allocation2], 32
        %v242 = vld [vmem:[%s241] sm:$0xf]
        %v243 = vld [vmem:[%s241 + $0x4] sm:$0xf]
        %v244 = vld [vmem:[%s241 + $0x8] sm:$0xf]
        %v245 = vld [vmem:[%s241 + $0xc] sm:$0xf]
        %v246 = vld [vmem:[%s241 + $0x10] sm:$0xf]
        %v247 = vld [vmem:[%s241 + $0x14] sm:$0xf]
        %v248 = vld [vmem:[%s241 + $0x18] sm:$0xf]
        %v249 = vld [vmem:[%s241 + $0x1c] sm:$0xf]
        %v261 = vunpack.c.l.b16 %v222
        %v262 = vunpack.c.l.b16 %v223
        %v263 = vunpack.c.l.b16 %v224
        %v264 = vunpack.c.l.b16 %v225
        %v265 = vunpack.c.l.b16 %v226
        %v266 = vunpack.c.l.b16 %v227
        %v267 = vunpack.c.l.b16 %v228
        %v268 = vunpack.c.l.b16 %v229
        %v269 = vunpack.c.l.b16 %v230
        %v270 = vunpack.c.l.b16 %v231
        %v271 = vunpack.c.l.b16 %v240
        %v272 = vpack.c.b16 %v262, %v261
        %v273 = vpack.c.b16 %v264, %v263
        %v274 = vpack.c.b16 %v266, %v265
        %v275 = vpack.c.b16 %v268, %v267
        %v276 = vpack.c.b16 %v270, %v269
        %v277 = vpack.c.b16 %v271, %v271
        %vm278 = vsmask.f32 7424
        %v280 = vshrl.u32 %v272, 16
        %v282 = vshll.u32 %v272, 16
        %v284 = vrot.slane %v282, 1
        %v285 = vor.u32 %v280, %v284
        %v287 = vshll.u32 %v273, 16
        %v289 = vrot.slane %v287, 1
        %v290 = vsel %vm278, %v285, %v289
        %v291 = vshrl.u32 %v273, 16
        %v293 = vor.u32 %v291, %v289
        %v295 = vshll.u32 %v274, 16
        %v297 = vrot.slane %v295, 1
        %v298 = vsel %vm278, %v293, %v297
        %v299 = vshrl.u32 %v274, 16
        %v301 = vor.u32 %v299, %v297
        %v303 = vshll.u32 %v275, 16
        %v305 = vrot.slane %v303, 1
        %v306 = vsel %vm278, %v301, %v305
        %v307 = vshrl.u32 %v275, 16
        %v309 = vor.u32 %v307, %v305
        %v311 = vshll.u32 %v276, 16
        %v313 = vrot.slane %v311, 1
        %v314 = vsel %vm278, %v309, %v313
        %v315 = vshrl.u32 %v276, 16
        %v317 = vor.u32 %v315, %v313
        %v319 = vshll.u32 %v277, 16
        %v321 = vrot.slane %v319, 1
        %v322 = vsel %vm278, %v317, %v321
        %v331 = vunpack.c.l.b16 %v242
        %v332 = vunpack.c.l.b16 %v243
        %v333 = vunpack.c.l.b16 %v244
        %v334 = vunpack.c.l.b16 %v245
        %v335 = vunpack.c.l.b16 %v246
        %v336 = vunpack.c.l.b16 %v247
        %v337 = vunpack.c.l.b16 %v248
        %v338 = vunpack.c.l.b16 %v249
        %v339 = vpack.c.b16 %v332, %v331
        %v340 = vpack.c.b16 %v334, %v333
        %v341 = vpack.c.b16 %v336, %v335
        %v342 = vpack.c.b16 %v338, %v337
        %vm347 = vcmask 523264
        %v349 = vsel %vm347, %v290, 0
        %v352 = vsel %vm347, %v298, 0
        %v355 = vsel %vm347, %v306, 0
        %v358 = vsel %vm347, %v314, 0
        %v361 = vsel %vm347, %v322, 0
        %363 = vmatpush.bf16.msra.mxu0 0
        %364 = vmatpush.bf16.msra.mxu0 0
        %365 = vmatpush.bf16.msra.mxu0 0
        %366 = vmatpush.bf16.msra.mxu0 0
        %367 = vmatpush.bf16.msra.mxu0 %v342
        %368 = vmatpush.bf16.msra.mxu0 %v341
        %369 = vmatpush.bf16.msra.mxu0 %v340
        %370 = vmatpush.bf16.msra.mxu0 %v339
        %371 = vmatmul.bf16.gmra.mxu0 %v349
        %v372 = vpop.f32.mrf.mxu0
        %v373 = vadd.f32 0.0, %v372
        %v374 = vpop.f32.mrf.mxu0
        %v375 = vadd.f32 0.0, %v374
        %376 = vmatmul.bf16.gmra.mxu0 %v352
        %v377 = vpop.f32.mrf.mxu0
        %v378 = vadd.f32 0.0, %v377
        %v379 = vpop.f32.mrf.mxu0
        %v380 = vadd.f32 0.0, %v379
        %381 = vmatmul.bf16.gmra.mxu0 %v355
        %v382 = vpop.f32.mrf.mxu0
        %v383 = vadd.f32 0.0, %v382
        %v384 = vpop.f32.mrf.mxu0
        %v385 = vadd.f32 0.0, %v384
        %386 = vmatmul.bf16.gmra.mxu0 %v358
        %v387 = vpop.f32.mrf.mxu0
        %v388 = vadd.f32 0.0, %v387
        %v389 = vpop.f32.mrf.mxu0
        %v390 = vadd.f32 0.0, %v389
        %391 = vmatmul.bf16.gmra.mxu0 %v361
        %v392 = vpop.f32.mrf.mxu0
        %v393 = vadd.f32 0.0, %v392
        %v394 = vpop.f32.mrf.mxu0
        %v395 = vadd.f32 0.0, %v394
        %396 = vdwg.mxu0
        %v405 = vunpack.c.l.b16 %v232
        %v406 = vunpack.c.l.b16 %v233
        %v407 = vunpack.c.l.b16 %v234
        %v408 = vunpack.c.l.b16 %v235
        %v409 = vunpack.c.l.b16 %v236
        %v410 = vunpack.c.l.b16 %v237
        %v411 = vunpack.c.l.b16 %v238
        %v412 = vunpack.c.l.b16 %v239
        %v413 = vpack.c.b16 %v406, %v405
        %v414 = vpack.c.b16 %v408, %v407
        %v415 = vpack.c.b16 %v410, %v409
        %v416 = vpack.c.b16 %v412, %v411
        %v421 = vsel %vm347, %v272, 0
        %v423 = vsel %vm347, %v273, 0
        %v425 = vsel %vm347, %v274, 0
        %v427 = vsel %vm347, %v275, 0
        %v429 = vsel %vm347, %v276, 0
        %431 = vmatpush.bf16.msra.mxu0 0
        %432 = vmatpush.bf16.msra.mxu0 0
        %433 = vmatpush.bf16.msra.mxu0 0
        %434 = vmatpush.bf16.msra.mxu0 0
        %435 = vmatpush.bf16.msra.mxu0 %v416
        %436 = vmatpush.bf16.msra.mxu0 %v415
        %437 = vmatpush.bf16.msra.mxu0 %v414
        %438 = vmatpush.bf16.msra.mxu0 %v413
        %439 = vmatmul.bf16.gmra.mxu0 %v421
        %v440 = vpop.f32.mrf.mxu0
        %v441 = vadd.f32 %v373, %v440
        %v442 = vpop.f32.mrf.mxu0
        %v443 = vadd.f32 %v375, %v442
        %444 = vmatmul.bf16.gmra.mxu0 %v423
        %v445 = vpop.f32.mrf.mxu0
        %v446 = vadd.f32 %v378, %v445
        %v447 = vpop.f32.mrf.mxu0
        %v448 = vadd.f32 %v380, %v447
        %449 = vmatmul.bf16.gmra.mxu0 %v425
        %v450 = vpop.f32.mrf.mxu0
        %v451 = vadd.f32 %v383, %v450
        %v452 = vpop.f32.mrf.mxu0
        %v453 = vadd.f32 %v385, %v452
        %454 = vmatmul.bf16.gmra.mxu0 %v427
        %v455 = vpop.f32.mrf.mxu0
        %v456 = vadd.f32 %v388, %v455
        %v457 = vpop.f32.mrf.mxu0
        %v458 = vadd.f32 %v390, %v457
        %459 = vmatmul.bf16.gmra.mxu0 %v429
        %v460 = vpop.f32.mrf.mxu0
        %v461 = vadd.f32 %v393, %v460
        %v462 = vpop.f32.mrf.mxu0
        %v463 = vadd.f32 %v395, %v462
        %464 = vdwg.mxu0
        %v465 = vld [vmem:[%s217] sm:$0xe]
        %s466 = scalar_lea.vmem [#allocation2], 64
        %v467 = vld [vmem:[%s466] sm:$0xf]
        %v468 = vld [vmem:[%s466 + $0x4] sm:$0xf]
        %v469 = vld [vmem:[%s466 + $0x8] sm:$0xf]
        %v470 = vld [vmem:[%s466 + $0xc] sm:$0xf]
        %v471 = vld [vmem:[%s466 + $0x10] sm:$0xf]
        %v472 = vld [vmem:[%s466 + $0x14] sm:$0xf]
        %v473 = vld [vmem:[%s466 + $0x18] sm:$0xf]
        %v474 = vld [vmem:[%s466 + $0x1c] sm:$0xf]
        %v476 = vunpack.c.l.b16 %v465
        %v477 = vpack.c.b16 %v262, %v476
        %vm478 = vcmask 1046528
        %v479 = vrot.slane %v477, 1
        %v480 = vrot.slane %v273, 1
        %v481 = vsel %vm478, %v479, %v480
        %v482 = vrot.slane %v274, 1
        %v483 = vsel %vm478, %v480, %v482
        %v484 = vrot.slane %v275, 1
        %v485 = vsel %vm478, %v482, %v484
        %v486 = vrot.slane %v276, 1
        %v487 = vsel %vm478, %v484, %v486
        %v488 = vrot.slane %v277, 1
        %v489 = vsel %vm478, %v486, %v488
        %v498 = vunpack.c.l.b16 %v467
        %v499 = vunpack.c.l.b16 %v468
        %v500 = vunpack.c.l.b16 %v469
        %v501 = vunpack.c.l.b16 %v470
        %v502 = vunpack.c.l.b16 %v471
        %v503 = vunpack.c.l.b16 %v472
        %v504 = vunpack.c.l.b16 %v473
        %v505 = vunpack.c.l.b16 %v474
        %v506 = vpack.c.b16 %v499, %v498
        %v507 = vpack.c.b16 %v501, %v500
        %v508 = vpack.c.b16 %v503, %v502
        %v509 = vpack.c.b16 %v505, %v504
        %v515 = vsel %vm347, %v481, 0
        %v518 = vsel %vm347, %v483, 0
        %v521 = vsel %vm347, %v485, 0
        %v524 = vsel %vm347, %v487, 0
        %v527 = vsel %vm347, %v489, 0
        %529 = vmatpush.bf16.msra.mxu0 0
        %530 = vmatpush.bf16.msra.mxu0 0
        %531 = vmatpush.bf16.msra.mxu0 0
        %532 = vmatpush.bf16.msra.mxu0 0
        %533 = vmatpush.bf16.msra.mxu0 %v509
        %534 = vmatpush.bf16.msra.mxu0 %v508
        %535 = vmatpush.bf16.msra.mxu0 %v507
        %536 = vmatpush.bf16.msra.mxu0 %v506
        %537 = vmatmul.bf16.gmra.mxu0 %v515
        %v538 = vpop.f32.mrf.mxu0
        %v539 = vadd.f32 0.0, %v538
        %v540 = vpop.f32.mrf.mxu0
        %v541 = vadd.f32 0.0, %v540
        %542 = vmatmul.bf16.gmra.mxu0 %v518
        %v543 = vpop.f32.mrf.mxu0
        %v544 = vadd.f32 0.0, %v543
        %v545 = vpop.f32.mrf.mxu0
        %v546 = vadd.f32 0.0, %v545
        %547 = vmatmul.bf16.gmra.mxu0 %v521
        %v548 = vpop.f32.mrf.mxu0
        %v549 = vadd.f32 0.0, %v548
        %v550 = vpop.f32.mrf.mxu0
        %v551 = vadd.f32 0.0, %v550
        %552 = vmatmul.bf16.gmra.mxu0 %v524
        %v553 = vpop.f32.mrf.mxu0
        %v554 = vadd.f32 0.0, %v553
        %v555 = vpop.f32.mrf.mxu0
        %v556 = vadd.f32 0.0, %v555
        %557 = vmatmul.bf16.gmra.mxu0 %v527
        %v558 = vpop.f32.mrf.mxu0
        %v559 = vadd.f32 0.0, %v558
        %v560 = vpop.f32.mrf.mxu0
        %v561 = vadd.f32 0.0, %v560
        %562 = vdwg.mxu0
        %v563 = vadd.f32 %v441, %v539
        %v564 = vadd.f32 %v443, %v541
        %v565 = vadd.f32 %v446, %v544
        %v566 = vadd.f32 %v448, %v546
        %v567 = vadd.f32 %v451, %v549
        %v568 = vadd.f32 %v453, %v551
        %v569 = vadd.f32 %v456, %v554
        %v570 = vadd.f32 %v458, %v556
        %v571 = vadd.f32 %v461, %v559
        %v572 = vadd.f32 %v463, %v561
        %v573 = vld [vmem:[%s217 + $0x4] sm:$0xe]
        %v574 = vld [vmem:[%s217 + $0x8] sm:$0xf]
        %v575 = vld [vmem:[%s217 + $0xc] sm:$0xf]
        %v576 = vld [vmem:[%s217 + $0x10] sm:$0xf]
        %v577 = vld [vmem:[%s217 + $0x14] sm:$0xf]
        %v578 = vld [vmem:[%s217 + $0x18] sm:$0xf]
        %v579 = vld [vmem:[%s217 + $0x1c] sm:$0xf]
        %v580 = vld [vmem:[%s217 + $0x20] sm:$0xf]
        %v581 = vld [vmem:[%s217 + $0x24] sm:$0xf]
        %v582 = vld [vmem:[%s217 + $0x28] sm:$0xf]
        %v583 = vld [vmem:[%s217 + $0x2c] sm:$0x1]
        %s584 = scalar_lea.vmem [#allocation2], 96
        %v585 = vld [vmem:[%s584] sm:$0xf]
        %v586 = vld [vmem:[%s584 + $0x4] sm:$0xf]
        %v587 = vld [vmem:[%s584 + $0x8] sm:$0xf]
        %v588 = vld [vmem:[%s584 + $0xc] sm:$0xf]
        %v589 = vld [vmem:[%s584 + $0x10] sm:$0xf]
        %v590 = vld [vmem:[%s584 + $0x14] sm:$0xf]
        %v591 = vld [vmem:[%s584 + $0x18] sm:$0xf]
        %v592 = vld [vmem:[%s584 + $0x1c] sm:$0xf]
        %v604 = vunpack.c.l.b16 %v573
        %v605 = vunpack.c.l.b16 %v574
        %v606 = vunpack.c.l.b16 %v575
        %v607 = vunpack.c.l.b16 %v576
        %v608 = vunpack.c.l.b16 %v577
        %v609 = vunpack.c.l.b16 %v578
        %v610 = vunpack.c.l.b16 %v579
        %v611 = vunpack.c.l.b16 %v580
        %v612 = vunpack.c.l.b16 %v581
        %v613 = vunpack.c.l.b16 %v582
        %v614 = vunpack.c.l.b16 %v583
        %v615 = vpack.c.b16 %v605, %v604
        %v616 = vpack.c.b16 %v607, %v606
        %v617 = vpack.c.b16 %v609, %v608
        %v618 = vpack.c.b16 %v611, %v610
        %v619 = vpack.c.b16 %v613, %v612
        %v620 = vpack.c.b16 %v614, %v614
        %v621 = vrot.slane %v615, 1
        %v622 = vrot.slane %v616, 1
        %v623 = vsel %vm478, %v621, %v622
        %v624 = vrot.slane %v617, 1
        %v625 = vsel %vm478, %v622, %v624
        %v626 = vrot.slane %v618, 1
        %v627 = vsel %vm478, %v624, %v626
        %v628 = vrot.slane %v619, 1
        %v629 = vsel %vm478, %v626, %v628
        %v630 = vrot.slane %v620, 1
        %v631 = vsel %vm478, %v628, %v630
        %v640 = vunpack.c.l.b16 %v585
        %v641 = vunpack.c.l.b16 %v586
        %v642 = vunpack.c.l.b16 %v587
        %v643 = vunpack.c.l.b16 %v588
        %v644 = vunpack.c.l.b16 %v589
        %v645 = vunpack.c.l.b16 %v590
        %v646 = vunpack.c.l.b16 %v591
        %v647 = vunpack.c.l.b16 %v592
        %v648 = vpack.c.b16 %v641, %v640
        %v649 = vpack.c.b16 %v643, %v642
        %v650 = vpack.c.b16 %v645, %v644
        %v651 = vpack.c.b16 %v647, %v646
        %v657 = vsel %vm347, %v623, 0
        %v660 = vsel %vm347, %v625, 0
        %v663 = vsel %vm347, %v627, 0
        %v666 = vsel %vm347, %v629, 0
        %v669 = vsel %vm347, %v631, 0
        %671 = vmatpush.bf16.msra.mxu0 0
        %672 = vmatpush.bf16.msra.mxu0 0
        %673 = vmatpush.bf16.msra.mxu0 0
        %674 = vmatpush.bf16.msra.mxu0 0
        %675 = vmatpush.bf16.msra.mxu0 %v651
        %676 = vmatpush.bf16.msra.mxu0 %v650
        %677 = vmatpush.bf16.msra.mxu0 %v649
        %678 = vmatpush.bf16.msra.mxu0 %v648
        %679 = vmatmul.bf16.gmra.mxu0 %v657
        %v680 = vpop.f32.mrf.mxu0
        %v681 = vadd.f32 0.0, %v680
        %v682 = vpop.f32.mrf.mxu0
        %v683 = vadd.f32 0.0, %v682
        %684 = vmatmul.bf16.gmra.mxu0 %v660
        %v685 = vpop.f32.mrf.mxu0
        %v686 = vadd.f32 0.0, %v685
        %v687 = vpop.f32.mrf.mxu0
        %v688 = vadd.f32 0.0, %v687
        %689 = vmatmul.bf16.gmra.mxu0 %v663
        %v690 = vpop.f32.mrf.mxu0
        %v691 = vadd.f32 0.0, %v690
        %v692 = vpop.f32.mrf.mxu0
        %v693 = vadd.f32 0.0, %v692
        %694 = vmatmul.bf16.gmra.mxu0 %v666
        %v695 = vpop.f32.mrf.mxu0
        %v696 = vadd.f32 0.0, %v695
        %v697 = vpop.f32.mrf.mxu0
        %v698 = vadd.f32 0.0, %v697
        %699 = vmatmul.bf16.gmra.mxu0 %v669
        %v700 = vpop.f32.mrf.mxu0
        %v701 = vadd.f32 0.0, %v700
        %v702 = vpop.f32.mrf.mxu0
        %v703 = vadd.f32 0.0, %v702
        %704 = vdwg.mxu0
        %v705 = vadd.f32 %v563, %v681
        %v706 = vadd.f32 %v564, %v683
        %v707 = vadd.f32 %v565, %v686
        %v708 = vadd.f32 %v566, %v688
        %v709 = vadd.f32 %v567, %v691
        %v710 = vadd.f32 %v568, %v693
        %v711 = vadd.f32 %v569, %v696
        %v712 = vadd.f32 %v570, %v698
        %v713 = vadd.f32 %v571, %v701
        %v714 = vadd.f32 %v572, %v703
        %v715 = vld [vmem:[%s217 + $0x2c] sm:$0x3]
        %s716 = scalar_lea.vmem [#allocation2], 128
        %v717 = vld [vmem:[%s716] sm:$0xf]
        %v718 = vld [vmem:[%s716 + $0x4] sm:$0xf]
        %v719 = vld [vmem:[%s716 + $0x8] sm:$0xf]
        %v720 = vld [vmem:[%s716 + $0xc] sm:$0xf]
        %v721 = vld [vmem:[%s716 + $0x10] sm:$0xf]
        %v722 = vld [vmem:[%s716 + $0x14] sm:$0xf]
        %v723 = vld [vmem:[%s716 + $0x18] sm:$0xf]
        %v724 = vld [vmem:[%s716 + $0x1c] sm:$0xf]
        %v726 = vunpack.c.l.b16 %v715
        %v727 = vpack.c.b16 %v726, %v726
        %vm728 = vsmask.f32 6400
        %v730 = vshrl.u32 %v615, 16
        %v732 = vrot.slane %v730, 1
        %v733 = vshll.u32 %v615, 16
        %v735 = vrot.slane %v733, 2
        %v736 = vor.u32 %v732, %v735
        %v738 = vshrl.u32 %v616, 16
        %v740 = vrot.slane %v738, 1
        %v741 = vshll.u32 %v616, 16
        %v743 = vrot.slane %v741, 2
        %v744 = vor.u32 %v740, %v743
        %v745 = vsel %vm728, %v736, %v744
        %v747 = vshrl.u32 %v617, 16
        %v749 = vrot.slane %v747, 1
        %v750 = vshll.u32 %v617, 16
        %v752 = vrot.slane %v750, 2
        %v753 = vor.u32 %v749, %v752
        %v754 = vsel %vm728, %v744, %v753
        %v756 = vshrl.u32 %v618, 16
        %v758 = vrot.slane %v756, 1
        %v759 = vshll.u32 %v618, 16
        %v761 = vrot.slane %v759, 2
        %v762 = vor.u32 %v758, %v761
        %v763 = vsel %vm728, %v753, %v762
        %v765 = vshrl.u32 %v619, 16
        %v767 = vrot.slane %v765, 1
        %v768 = vshll.u32 %v619, 16
        %v770 = vrot.slane %v768, 2
        %v771 = vor.u32 %v767, %v770
        %v772 = vsel %vm728, %v762, %v771
        %v774 = vshrl.u32 %v727, 16
        %v776 = vrot.slane %v774, 1
        %v777 = vshll.u32 %v727, 16
        %v779 = vrot.slane %v777, 2
        %v780 = vor.u32 %v776, %v779
        %v781 = vsel %vm728, %v771, %v780
        %v790 = vunpack.c.l.b16 %v717
        %v791 = vunpack.c.l.b16 %v718
        %v792 = vunpack.c.l.b16 %v719
        %v793 = vunpack.c.l.b16 %v720
        %v794 = vunpack.c.l.b16 %v721
        %v795 = vunpack.c.l.b16 %v722
        %v796 = vunpack.c.l.b16 %v723
        %v797 = vunpack.c.l.b16 %v724
        %v798 = vpack.c.b16 %v791, %v790
        %v799 = vpack.c.b16 %v793, %v792
        %v800 = vpack.c.b16 %v795, %v794
        %v801 = vpack.c.b16 %v797, %v796
        %v807 = vsel %vm347, %v745, 0
        %v810 = vsel %vm347, %v754, 0
        %v813 = vsel %vm347, %v763, 0
        %v816 = vsel %vm347, %v772, 0
        %v819 = vsel %vm347, %v781, 0
        %821 = vmatpush.bf16.msra.mxu0 0
        %822 = vmatpush.bf16.msra.mxu0 0
        %823 = vmatpush.bf16.msra.mxu0 0
        %824 = vmatpush.bf16.msra.mxu0 0
        %825 = vmatpush.bf16.msra.mxu0 %v801
        %826 = vmatpush.bf16.msra.mxu0 %v800
        %827 = vmatpush.bf16.msra.mxu0 %v799
        %828 = vmatpush.bf16.msra.mxu0 %v798
        %829 = vmatmul.bf16.gmra.mxu0 %v807
        %v830 = vpop.f32.mrf.mxu0
        %v831 = vadd.f32 0.0, %v830
        %v832 = vpop.f32.mrf.mxu0
        %v833 = vadd.f32 0.0, %v832
        %834 = vmatmul.bf16.gmra.mxu0 %v810
        %v835 = vpop.f32.mrf.mxu0
        %v836 = vadd.f32 0.0, %v835
        %v837 = vpop.f32.mrf.mxu0
        %v838 = vadd.f32 0.0, %v837
        %839 = vmatmul.bf16.gmra.mxu0 %v813
        %v840 = vpop.f32.mrf.mxu0
        %v841 = vadd.f32 0.0, %v840
        %v842 = vpop.f32.mrf.mxu0
        %v843 = vadd.f32 0.0, %v842
        %844 = vmatmul.bf16.gmra.mxu0 %v816
        %v845 = vpop.f32.mrf.mxu0
        %v846 = vadd.f32 0.0, %v845
        %v847 = vpop.f32.mrf.mxu0
        %v848 = vadd.f32 0.0, %v847
        %849 = vmatmul.bf16.gmra.mxu0 %v819
        %v850 = vpop.f32.mrf.mxu0
        %v851 = vadd.f32 0.0, %v850
        %v852 = vpop.f32.mrf.mxu0
        %v853 = vadd.f32 0.0, %v852
        %854 = vdwg.mxu0
        %v855 = vadd.f32 %v705, %v831
        %v856 = vadd.f32 %v706, %v833
        %v857 = vadd.f32 %v707, %v836
        %v858 = vadd.f32 %v708, %v838
        %v859 = vadd.f32 %v709, %v841
        %v860 = vadd.f32 %v710, %v843
        %v861 = vadd.f32 %v711, %v846
        %v862 = vadd.f32 %v712, %v848
        %v863 = vadd.f32 %v713, %v851
        %v864 = vadd.f32 %v714, %v853
        %v865 = vld [vmem:[%s217 + $0x4] sm:$0xc]
        %s866 = scalar_lea.vmem [#allocation2], 160
        %v867 = vld [vmem:[%s866] sm:$0xf]
        %v868 = vld [vmem:[%s866 + $0x4] sm:$0xf]
        %v869 = vld [vmem:[%s866 + $0x8] sm:$0xf]
        %v870 = vld [vmem:[%s866 + $0xc] sm:$0xf]
        %v871 = vld [vmem:[%s866 + $0x10] sm:$0xf]
        %v872 = vld [vmem:[%s866 + $0x14] sm:$0xf]
        %v873 = vld [vmem:[%s866 + $0x18] sm:$0xf]
        %v874 = vld [vmem:[%s866 + $0x1c] sm:$0xf]
        %v876 = vunpack.c.l.b16 %v865
        %v877 = vpack.c.b16 %v605, %v876
        %vm878 = vcmask 1045504
        %v879 = vrot.slane %v877, 2
        %v880 = vrot.slane %v616, 2
        %v881 = vsel %vm878, %v879, %v880
        %v882 = vrot.slane %v617, 2
        %v883 = vsel %vm878, %v880, %v882
        %v884 = vrot.slane %v618, 2
        %v885 = vsel %vm878, %v882, %v884
        %v886 = vrot.slane %v619, 2
        %v887 = vsel %vm878, %v884, %v886
        %v888 = vrot.slane %v727, 2
        %v889 = vsel %vm878, %v886, %v888
        %v898 = vunpack.c.l.b16 %v867
        %v899 = vunpack.c.l.b16 %v868
        %v900 = vunpack.c.l.b16 %v869
        %v901 = vunpack.c.l.b16 %v870
        %v902 = vunpack.c.l.b16 %v871
        %v903 = vunpack.c.l.b16 %v872
        %v904 = vunpack.c.l.b16 %v873
        %v905 = vunpack.c.l.b16 %v874
        %v906 = vpack.c.b16 %v899, %v898
        %v907 = vpack.c.b16 %v901, %v900
        %v908 = vpack.c.b16 %v903, %v902
        %v909 = vpack.c.b16 %v905, %v904
        %v915 = vsel %vm347, %v881, 0
        %v918 = vsel %vm347, %v883, 0
        %v921 = vsel %vm347, %v885, 0
        %v924 = vsel %vm347, %v887, 0
        %v927 = vsel %vm347, %v889, 0
        %929 = vmatpush.bf16.msra.mxu0 0
        %930 = vmatpush.bf16.msra.mxu0 0
        %931 = vmatpush.bf16.msra.mxu0 0
        %932 = vmatpush.bf16.msra.mxu0 0
        %933 = vmatpush.bf16.msra.mxu0 %v909
        %934 = vmatpush.bf16.msra.mxu0 %v908
        %935 = vmatpush.bf16.msra.mxu0 %v907
        %936 = vmatpush.bf16.msra.mxu0 %v906
        %937 = vmatmul.bf16.gmra.mxu0 %v915
        %v938 = vpop.f32.mrf.mxu0
        %v939 = vadd.f32 0.0, %v938
        %v940 = vpop.f32.mrf.mxu0
        %v941 = vadd.f32 0.0, %v940
        %942 = vmatmul.bf16.gmra.mxu0 %v918
        %v943 = vpop.f32.mrf.mxu0
        %v944 = vadd.f32 0.0, %v943
        %v945 = vpop.f32.mrf.mxu0
        %v946 = vadd.f32 0.0, %v945
        %947 = vmatmul.bf16.gmra.mxu0 %v921
        %v948 = vpop.f32.mrf.mxu0
        %v949 = vadd.f32 0.0, %v948
        %v950 = vpop.f32.mrf.mxu0
        %v951 = vadd.f32 0.0, %v950
        %952 = vmatmul.bf16.gmra.mxu0 %v924
        %v953 = vpop.f32.mrf.mxu0
        %v954 = vadd.f32 0.0, %v953
        %v955 = vpop.f32.mrf.mxu0
        %v956 = vadd.f32 0.0, %v955
        %957 = vmatmul.bf16.gmra.mxu0 %v927
        %v958 = vpop.f32.mrf.mxu0
        %v959 = vadd.f32 0.0, %v958
        %v960 = vpop.f32.mrf.mxu0
        %v961 = vadd.f32 0.0, %v960
        %962 = vdwg.mxu0
        %v963 = vadd.f32 %v855, %v939
        %v964 = vadd.f32 %v856, %v941
        %v965 = vadd.f32 %v857, %v944
        %v966 = vadd.f32 %v858, %v946
        %v967 = vadd.f32 %v859, %v949
        %v968 = vadd.f32 %v860, %v951
        %v969 = vadd.f32 %v861, %v954
        %v970 = vadd.f32 %v862, %v956
        %v971 = vadd.f32 %v863, %v959
        %v972 = vadd.f32 %v864, %v961
        %v973 = vld [vmem:[%s217 + $0x8] sm:$0xc]
        %v974 = vld [vmem:[%s217 + $0xc] sm:$0xf]
        %v975 = vld [vmem:[%s217 + $0x10] sm:$0xf]
        %v976 = vld [vmem:[%s217 + $0x14] sm:$0xf]
        %v977 = vld [vmem:[%s217 + $0x18] sm:$0xf]
        %v978 = vld [vmem:[%s217 + $0x1c] sm:$0xf]
        %v979 = vld [vmem:[%s217 + $0x20] sm:$0xf]
        %v980 = vld [vmem:[%s217 + $0x24] sm:$0xf]
        %v981 = vld [vmem:[%s217 + $0x28] sm:$0xf]
        %v982 = vld [vmem:[%s217 + $0x2c] sm:$0xf]
        %v983 = vld [vmem:[%s217 + $0x30] sm:$0x3]
        %s984 = scalar_lea.vmem [#allocation2], 192
        %v985 = vld [vmem:[%s984] sm:$0xf]
        %v986 = vld [vmem:[%s984 + $0x4] sm:$0xf]
        %v987 = vld [vmem:[%s984 + $0x8] sm:$0xf]
        %v988 = vld [vmem:[%s984 + $0xc] sm:$0xf]
        %v989 = vld [vmem:[%s984 + $0x10] sm:$0xf]
        %v990 = vld [vmem:[%s984 + $0x14] sm:$0xf]
        %v991 = vld [vmem:[%s984 + $0x18] sm:$0xf]
        %v992 = vld [vmem:[%s984 + $0x1c] sm:$0xf]
        %v1004 = vunpack.c.l.b16 %v973
        %v1005 = vunpack.c.l.b16 %v974
        %v1006 = vunpack.c.l.b16 %v975
        %v1007 = vunpack.c.l.b16 %v976
        %v1008 = vunpack.c.l.b16 %v977
        %v1009 = vunpack.c.l.b16 %v978
        %v1010 = vunpack.c.l.b16 %v979
        %v1011 = vunpack.c.l.b16 %v980
        %v1012 = vunpack.c.l.b16 %v981
        %v1013 = vunpack.c.l.b16 %v982
        %v1014 = vunpack.c.l.b16 %v983
        %v1015 = vpack.c.b16 %v1005, %v1004
        %v1016 = vpack.c.b16 %v1007, %v1006
        %v1017 = vpack.c.b16 %v1009, %v1008
        %v1018 = vpack.c.b16 %v1011, %v1010
        %v1019 = vpack.c.b16 %v1013, %v1012
        %v1020 = vpack.c.b16 %v1014, %v1014
        %v1021 = vrot.slane %v1015, 2
        %v1022 = vrot.slane %v1016, 2
        %v1023 = vsel %vm878, %v1021, %v1022
        %v1024 = vrot.slane %v1017, 2
        %v1025 = vsel %vm878, %v1022, %v1024
        %v1026 = vrot.slane %v1018, 2
        %v1027 = vsel %vm878, %v1024, %v1026
        %v1028 = vrot.slane %v1019, 2
        %v1029 = vsel %vm878, %v1026, %v1028
        %v1030 = vrot.slane %v1020, 2
        %v1031 = vsel %vm878, %v1028, %v1030
        %v1040 = vunpack.c.l.b16 %v985
        %v1041 = vunpack.c.l.b16 %v986
        %v1042 = vunpack.c.l.b16 %v987
        %v1043 = vunpack.c.l.b16 %v988
        %v1044 = vunpack.c.l.b16 %v989
        %v1045 = vunpack.c.l.b16 %v990
        %v1046 = vunpack.c.l.b16 %v991
        %v1047 = vunpack.c.l.b16 %v992
        %v1048 = vpack.c.b16 %v1041, %v1040
        %v1049 = vpack.c.b16 %v1043, %v1042
        %v1050 = vpack.c.b16 %v1045, %v1044
        %v1051 = vpack.c.b16 %v1047, %v1046
        %v1057 = vsel %vm347, %v1023, 0
        %v1060 = vsel %vm347, %v1025, 0
        %v1063 = vsel %vm347, %v1027, 0
        %v1066 = vsel %vm347, %v1029, 0
        %v1069 = vsel %vm347, %v1031, 0
        %1071 = vmatpush.bf16.msra.mxu0 0
        %1072 = vmatpush.bf16.msra.mxu0 0
        %1073 = vmatpush.bf16.msra.mxu0 0
        %1074 = vmatpush.bf16.msra.mxu0 0
        %1075 = vmatpush.bf16.msra.mxu0 %v1051
        %1076 = vmatpush.bf16.msra.mxu0 %v1050
        %1077 = vmatpush.bf16.msra.mxu0 %v1049
        %1078 = vmatpush.bf16.msra.mxu0 %v1048
        %1079 = vmatmul.bf16.gmra.mxu0 %v1057
        %v1080 = vpop.f32.mrf.mxu0
        %v1081 = vadd.f32 0.0, %v1080
        %v1082 = vpop.f32.mrf.mxu0
        %v1083 = vadd.f32 0.0, %v1082
        %1084 = vmatmul.bf16.gmra.mxu0 %v1060
        %v1085 = vpop.f32.mrf.mxu0
        %v1086 = vadd.f32 0.0, %v1085
        %v1087 = vpop.f32.mrf.mxu0
        %v1088 = vadd.f32 0.0, %v1087
        %1089 = vmatmul.bf16.gmra.mxu0 %v1063
        %v1090 = vpop.f32.mrf.mxu0
        %v1091 = vadd.f32 0.0, %v1090
        %v1092 = vpop.f32.mrf.mxu0
        %v1093 = vadd.f32 0.0, %v1092
        %1094 = vmatmul.bf16.gmra.mxu0 %v1066
        %v1095 = vpop.f32.mrf.mxu0
        %v1096 = vadd.f32 0.0, %v1095
        %v1097 = vpop.f32.mrf.mxu0
        %v1098 = vadd.f32 0.0, %v1097
        %1099 = vmatmul.bf16.gmra.mxu0 %v1069
        %v1100 = vpop.f32.mrf.mxu0
        %v1101 = vadd.f32 0.0, %v1100
        %v1102 = vpop.f32.mrf.mxu0
        %v1103 = vadd.f32 0.0, %v1102
        %1104 = vdwg.mxu0
        %v1105 = vadd.f32 %v963, %v1081
        %v1106 = vadd.f32 %v964, %v1083
        %v1107 = vadd.f32 %v965, %v1086
        %v1108 = vadd.f32 %v966, %v1088
        %v1109 = vadd.f32 %v967, %v1091
        %v1110 = vadd.f32 %v968, %v1093
        %v1111 = vadd.f32 %v969, %v1096
        %v1112 = vadd.f32 %v970, %v1098
        %v1113 = vadd.f32 %v971, %v1101
        %v1114 = vadd.f32 %v972, %v1103
        %v1115 = vld [vmem:[%s217 + $0x30] sm:$0x7]
        %s1116 = scalar_lea.vmem [#allocation2], 224
        %v1117 = vld [vmem:[%s1116] sm:$0xf]
        %v1118 = vld [vmem:[%s1116 + $0x4] sm:$0xf]
        %v1119 = vld [vmem:[%s1116 + $0x8] sm:$0xf]
        %v1120 = vld [vmem:[%s1116 + $0xc] sm:$0xf]
        %v1121 = vld [vmem:[%s1116 + $0x10] sm:$0xf]
        %v1122 = vld [vmem:[%s1116 + $0x14] sm:$0xf]
        %v1123 = vld [vmem:[%s1116 + $0x18] sm:$0xf]
        %v1124 = vld [vmem:[%s1116 + $0x1c] sm:$0xf]
        %v1126 = vunpack.c.l.b16 %v1115
        %v1127 = vpack.c.b16 %v1126, %v1126
        %vm1128 = vsmask.f32 5376
        %v1130 = vshrl.u32 %v1015, 16
        %v1132 = vrot.slane %v1130, 2
        %v1133 = vshll.u32 %v1015, 16
        %v1135 = vrot.slane %v1133, 3
        %v1136 = vor.u32 %v1132, %v1135
        %v1138 = vshrl.u32 %v1016, 16
        %v1140 = vrot.slane %v1138, 2
        %v1141 = vshll.u32 %v1016, 16
        %v1143 = vrot.slane %v1141, 3
        %v1144 = vor.u32 %v1140, %v1143
        %v1145 = vsel %vm1128, %v1136, %v1144
        %v1147 = vshrl.u32 %v1017, 16
        %v1149 = vrot.slane %v1147, 2
        %v1150 = vshll.u32 %v1017, 16
        %v1152 = vrot.slane %v1150, 3
        %v1153 = vor.u32 %v1149, %v1152
        %v1154 = vsel %vm1128, %v1144, %v1153
        %v1156 = vshrl.u32 %v1018, 16
        %v1158 = vrot.slane %v1156, 2
        %v1159 = vshll.u32 %v1018, 16
        %v1161 = vrot.slane %v1159, 3
        %v1162 = vor.u32 %v1158, %v1161
        %v1163 = vsel %vm1128, %v1153, %v1162
        %v1165 = vshrl.u32 %v1019, 16
        %v1167 = vrot.slane %v1165, 2
        %v1168 = vshll.u32 %v1019, 16
        %v1170 = vrot.slane %v1168, 3
        %v1171 = vor.u32 %v1167, %v1170
        %v1172 = vsel %vm1128, %v1162, %v1171
        %v1174 = vshrl.u32 %v1127, 16
        %v1176 = vrot.slane %v1174, 2
        %v1177 = vshll.u32 %v1127, 16
        %v1179 = vrot.slane %v1177, 3
        %v1180 = vor.u32 %v1176, %v1179
        %v1181 = vsel %vm1128, %v1171, %v1180
        %v1190 = vunpack.c.l.b16 %v1117
        %v1191 = vunpack.c.l.b16 %v1118
        %v1192 = vunpack.c.l.b16 %v1119
        %v1193 = vunpack.c.l.b16 %v1120
        %v1194 = vunpack.c.l.b16 %v1121
        %v1195 = vunpack.c.l.b16 %v1122
        %v1196 = vunpack.c.l.b16 %v1123
        %v1197 = vunpack.c.l.b16 %v1124
        %v1198 = vpack.c.b16 %v1191, %v1190
        %v1199 = vpack.c.b16 %v1193, %v1192
        %v1200 = vpack.c.b16 %v1195, %v1194
        %v1201 = vpack.c.b16 %v1197, %v1196
        %v1207 = vsel %vm347, %v1145, 0
        %v1210 = vsel %vm347, %v1154, 0
        %v1213 = vsel %vm347, %v1163, 0
        %v1216 = vsel %vm347, %v1172, 0
        %v1219 = vsel %vm347, %v1181, 0
        %1221 = vmatpush.bf16.msra.mxu0 0
        %1222 = vmatpush.bf16.msra.mxu0 0
        %1223 = vmatpush.bf16.msra.mxu0 0
        %1224 = vmatpush.bf16.msra.mxu0 0
        %1225 = vmatpush.bf16.msra.mxu0 %v1201
        %1226 = vmatpush.bf16.msra.mxu0 %v1200
        %1227 = vmatpush.bf16.msra.mxu0 %v1199
        %1228 = vmatpush.bf16.msra.mxu0 %v1198
        %1229 = vmatmul.bf16.gmra.mxu0 %v1207
        %v1230 = vpop.f32.mrf.mxu0
        %v1231 = vadd.f32 0.0, %v1230
        %v1232 = vpop.f32.mrf.mxu0
        %v1233 = vadd.f32 0.0, %v1232
        %1234 = vmatmul.bf16.gmra.mxu0 %v1210
        %v1235 = vpop.f32.mrf.mxu0
        %v1236 = vadd.f32 0.0, %v1235
        %v1237 = vpop.f32.mrf.mxu0
        %v1238 = vadd.f32 0.0, %v1237
        %1239 = vmatmul.bf16.gmra.mxu0 %v1213
        %v1240 = vpop.f32.mrf.mxu0
        %v1241 = vadd.f32 0.0, %v1240
        %v1242 = vpop.f32.mrf.mxu0
        %v1243 = vadd.f32 0.0, %v1242
        %1244 = vmatmul.bf16.gmra.mxu0 %v1216
        %v1245 = vpop.f32.mrf.mxu0
        %v1246 = vadd.f32 0.0, %v1245
        %v1247 = vpop.f32.mrf.mxu0
        %v1248 = vadd.f32 0.0, %v1247
        %1249 = vmatmul.bf16.gmra.mxu0 %v1219
        %v1250 = vpop.f32.mrf.mxu0
        %v1251 = vadd.f32 0.0, %v1250
        %v1252 = vpop.f32.mrf.mxu0
        %v1253 = vadd.f32 0.0, %v1252
        %1254 = vdwg.mxu0
        %v1255 = vadd.f32 %v1105, %v1231
        %v1256 = vadd.f32 %v1106, %v1233
        %v1257 = vadd.f32 %v1107, %v1236
        %v1258 = vadd.f32 %v1108, %v1238
        %v1259 = vadd.f32 %v1109, %v1241
        %v1260 = vadd.f32 %v1110, %v1243
        %v1261 = vadd.f32 %v1111, %v1246
        %v1262 = vadd.f32 %v1112, %v1248
        %v1263 = vadd.f32 %v1113, %v1251
        %v1264 = vadd.f32 %v1114, %v1253
        %v1265 = vld [vmem:[%s217 + $0x8] sm:$0x8]
        %s1266 = scalar_lea.vmem [#allocation2], 256
        %v1267 = vld [vmem:[%s1266] sm:$0xf]
        %v1268 = vld [vmem:[%s1266 + $0x4] sm:$0xf]
        %v1269 = vld [vmem:[%s1266 + $0x8] sm:$0xf]
        %v1270 = vld [vmem:[%s1266 + $0xc] sm:$0xf]
        %v1271 = vld [vmem:[%s1266 + $0x10] sm:$0xf]
        %v1272 = vld [vmem:[%s1266 + $0x14] sm:$0xf]
        %v1273 = vld [vmem:[%s1266 + $0x18] sm:$0xf]
        %v1274 = vld [vmem:[%s1266 + $0x1c] sm:$0xf]
        %v1276 = vunpack.c.l.b16 %v1265
        %v1277 = vpack.c.b16 %v1005, %v1276
        %vm1278 = vcmask 1044480
        %v1279 = vrot.slane %v1277, 3
        %v1280 = vrot.slane %v1016, 3
        %v1281 = vsel %vm1278, %v1279, %v1280
        %v1282 = vrot.slane %v1017, 3
        %v1283 = vsel %vm1278, %v1280, %v1282
        %v1284 = vrot.slane %v1018, 3
        %v1285 = vsel %vm1278, %v1282, %v1284
        %v1286 = vrot.slane %v1019, 3
        %v1287 = vsel %vm1278, %v1284, %v1286
        %v1288 = vrot.slane %v1127, 3
        %v1289 = vsel %vm1278, %v1286, %v1288
        %v1298 = vunpack.c.l.b16 %v1267
        %v1299 = vunpack.c.l.b16 %v1268
        %v1300 = vunpack.c.l.b16 %v1269
        %v1301 = vunpack.c.l.b16 %v1270
        %v1302 = vunpack.c.l.b16 %v1271
        %v1303 = vunpack.c.l.b16 %v1272
        %v1304 = vunpack.c.l.b16 %v1273
        %v1305 = vunpack.c.l.b16 %v1274
        %v1306 = vpack.c.b16 %v1299, %v1298
        %v1307 = vpack.c.b16 %v1301, %v1300
        %v1308 = vpack.c.b16 %v1303, %v1302
        %v1309 = vpack.c.b16 %v1305, %v1304
        %v1315 = vsel %vm347, %v1281, 0
        %v1318 = vsel %vm347, %v1283, 0
        %v1321 = vsel %vm347, %v1285, 0
        %v1324 = vsel %vm347, %v1287, 0
        %v1327 = vsel %vm347, %v1289, 0
        %1329 = vmatpush.bf16.msra.mxu0 0
        %1330 = vmatpush.bf16.msra.mxu0 0
        %1331 = vmatpush.bf16.msra.mxu0 0
        %1332 = vmatpush.bf16.msra.mxu0 0
        %1333 = vmatpush.bf16.msra.mxu0 %v1309
        %1334 = vmatpush.bf16.msra.mxu0 %v1308
        %1335 = vmatpush.bf16.msra.mxu0 %v1307
        %1336 = vmatpush.bf16.msra.mxu0 %v1306
        %1337 = vmatmul.bf16.gmra.mxu0 %v1315
        %v1338 = vpop.f32.mrf.mxu0
        %v1339 = vadd.f32 0.0, %v1338
        %v1340 = vpop.f32.mrf.mxu0
        %v1341 = vadd.f32 0.0, %v1340
        %1342 = vmatmul.bf16.gmra.mxu0 %v1318
        %v1343 = vpop.f32.mrf.mxu0
        %v1344 = vadd.f32 0.0, %v1343
        %v1345 = vpop.f32.mrf.mxu0
        %v1346 = vadd.f32 0.0, %v1345
        %1347 = vmatmul.bf16.gmra.mxu0 %v1321
        %v1348 = vpop.f32.mrf.mxu0
        %v1349 = vadd.f32 0.0, %v1348
        %v1350 = vpop.f32.mrf.mxu0
        %v1351 = vadd.f32 0.0, %v1350
        %1352 = vmatmul.bf16.gmra.mxu0 %v1324
        %v1353 = vpop.f32.mrf.mxu0
        %v1354 = vadd.f32 0.0, %v1353
        %v1355 = vpop.f32.mrf.mxu0
        %v1356 = vadd.f32 0.0, %v1355
        %1357 = vmatmul.bf16.gmra.mxu0 %v1327
        %v1358 = vpop.f32.mrf.mxu0
        %v1359 = vadd.f32 0.0, %v1358
        %v1360 = vpop.f32.mrf.mxu0
        %v1361 = vadd.f32 0.0, %v1360
        %1362 = vdwg.mxu0
        %v1363 = vadd.f32 %v1255, %v1339
        %v1364 = vadd.f32 %v1256, %v1341
        %v1365 = vadd.f32 %v1257, %v1344
        %v1366 = vadd.f32 %v1258, %v1346
        %v1367 = vadd.f32 %v1259, %v1349
        %v1368 = vadd.f32 %v1260, %v1351
        %v1369 = vadd.f32 %v1261, %v1354
        %v1370 = vadd.f32 %v1262, %v1356
        %v1371 = vadd.f32 %v1263, %v1359
        %v1372 = vadd.f32 %v1264, %v1361
        %v1373 = vld [vmem:[%s220] sm:$0x1]
        %v1375 = vperm.slane %v1373, 0
        %v1377 = vadd.f32 %v1363, %v1375
        %v1378 = vadd.f32 %v1364, %v1375
        %v1379 = vadd.f32 %v1365, %v1375
        %v1380 = vadd.f32 %v1366, %v1375
        %v1381 = vadd.f32 %v1367, %v1375
        %v1382 = vadd.f32 %v1368, %v1375
        %v1383 = vadd.f32 %v1369, %v1375
        %v1384 = vadd.f32 %v1370, %v1375
        %v1385 = vadd.f32 %v1371, %v1375
        %v1386 = vadd.f32 %v1372, %v1375
        %v1387 = vpack.c.bf16 %v1377, %v1377
        %v1388 = vpack.c.bf16 %v1378, %v1378
        %v1389 = vpack.c.bf16 %v1379, %v1379
        %v1390 = vpack.c.bf16 %v1380, %v1380
        %v1391 = vpack.c.bf16 %v1381, %v1381
        %v1392 = vpack.c.bf16 %v1382, %v1382
        %v1393 = vpack.c.bf16 %v1383, %v1383
        %v1394 = vpack.c.bf16 %v1384, %v1384
        %v1395 = vpack.c.bf16 %v1385, %v1385
        %v1396 = vpack.c.bf16 %v1386, %v1386
        %1397 = vst [vmem:[%s212] sm:$0xf] %v1387
        %1398 = vst [vmem:[%s212 + $0x4] sm:$0xf] %v1388
        %1399 = vst [vmem:[%s212 + $0x8] sm:$0xf] %v1389
        %1400 = vst [vmem:[%s212 + $0xc] sm:$0xf] %v1390
        %1401 = vst [vmem:[%s212 + $0x10] sm:$0xf] %v1391
        %1402 = vst [vmem:[%s212 + $0x14] sm:$0xf] %v1392
        %1403 = vst [vmem:[%s212 + $0x18] sm:$0xf] %v1393
        %1404 = vst [vmem:[%s212 + $0x1c] sm:$0xf] %v1394
        %1405 = vst [vmem:[%s212 + $0x20] sm:$0xf] %v1395
        %1406 = vst [vmem:[%s212 + $0x24] sm:$0xf] %v1396
        %s1407 = sand.u32 %s118, 1
        %s1408 = scalar_lea.sflag [#allocation4], %s1407
        %s1409 = sand.u32 %s118, 1
        %s1410 = smul.addr %s1409, 40
        %s1411 = scalar_lea.vmem [#allocation5], %s1410
        // Predicated region
        $region37: #{tpu_custom_call.1} parent=31 // pred_check
          %p1412 = pneg %p128
        $region38: #{tpu_custom_call.1} parent=31 // pred_check_branch
          %1414 = sbr.rel (%p1412) target = $region40
        $region39: #{tpu_custom_call.1} parent=31 // pred_region
          %1416 = vsyncadd %s1408, 0
          %s1417 = smul.addr %s22, 10
          %s1418 = sadd.s32 %s23, %s1417
          %s1419 = smul.addr %s1418, 4
          %s1420 = scalar_lea.hbm %s3, %s1419
          %s1421 = sshll.u32 %s1411, 4
          %s1422 = int_to_ptr.vmem [resolvable:$true] %s1421
          %s1423 = sshll.u32 %s1420, 4
          %s1424 = int_to_ptr.hbm [resolvable:$true] %s1423
          %1429 = dma.vmem_to_hbm [thread:$0]  %s1422, 640, %s1424, %s1408, 64, 64, 4
        $region40: #{tpu_custom_call.1} parent=31 // pred_fallthru
          _
      $region32: #{tpu_custom_call.1} parent=5 // pred_fallthru
        _
      %p1430 = scmp.le.s32.totalorder 2, %s13
      // Predicated region
      $region41: #{tpu_custom_call.1} parent=5 // pred_check
        %p1431 = pneg %p1430
      $region42: #{tpu_custom_call.1} parent=5 // pred_check_branch
        %1433 = sbr.rel (%p1431) target = $region44
      $region43: #{tpu_custom_call.1} parent=5 // pred_region
        %s1434 = ssub.s32 %s13, 2
        // Predicated region
        $region45: #{tpu_custom_call.1} parent=43 // pred_check
          %p1435 = pneg %p134
        $region46: #{tpu_custom_call.1} parent=43 // pred_check_branch
          %1437 = sbr.rel (%p1435) target = $region48
        $region47: #{tpu_custom_call.1} parent=43 // pred_region
          %s1438 = sand.u32 %s119, 1
          %s1439 = scalar_lea.sflag [#allocation4], %s1438
          %s1440 = sand.u32 %s119, 1
          %s1441 = smul.addr %s1440, 40
          %s1442 = scalar_lea.vmem [#allocation5], %s1441
          %1444 = dma.done %s1439, 640
        $region48: #{tpu_custom_call.1} parent=43 // pred_fallthru
          _
      $region44: #{tpu_custom_call.1} parent=5 // pred_fallthru
        _
    $region6: #{tpu_custom_call.1} parent=1 // loop_footer
      %s17 = sadd.s32 1, %s13
    $region7: #{tpu_custom_call.1} parent=1 // loop_footer_branch
      %12 = sbr.rel target = $region3
    $region8: #{tpu_custom_call.1} parent=1 // loop_exit
      _
    %1445 = vsyncpa [#allocation3], 1
    %s1446 = scalar_lea.sflag [#allocation3], 1
    %1447 = vsyncpa %s1446, 1
    %1448 = vsyncpa [#allocation4], 1
    %s1449 = scalar_lea.sflag [#allocation4], 1
    %1450 = vsyncpa %s1449, 1

</llo_original>
